<compile_context>
chip_gen: v6e
topology: v6e:2x2x1
jax: 0.10.0
libtpu: 0.0.40
codegen_flags: <defaults>
</compile_context>

<pallas_src>
import functools

import jax
import jax.numpy as jnp
from jax import lax
from jax.experimental import pallas as pl
from jax.experimental.pallas import tpu as pltpu


NUM_GROUPS = 32
EPS = 1e-5


def _attn_block_kernel(x_ref, ggc_ref, gcg_ref, gamma_ref, beta_ref,
                       wqkv_ref, bqkv_ref, wo_ref, bo_ref, o_ref,
                       *, hw, n_groups):
    x = x_ref[0]                                  # (C, HWp) f32 (residual)
    C, hwp = x.shape
    cs = C // n_groups
    inv_n = 1.0 / float(cs * hw)                  # true element count per group

    # ---- GroupNorm(32, C): group stats via small indicator matmuls --------
    # Padded spatial columns are zero, so the row sums are exact.
    row_sum = jnp.sum(x, axis=1, keepdims=True)                        # (C, 1)
    row_sq = jnp.sum(x * x, axis=1, keepdims=True)                     # (C, 1)
    g_sum = jnp.dot(ggc_ref[...], row_sum, preferred_element_type=jnp.float32)
    g_sq = jnp.dot(ggc_ref[...], row_sq, preferred_element_type=jnp.float32)
    mean_g = g_sum * inv_n                                             # (G, 1)
    var_g = g_sq * inv_n - mean_g * mean_g
    rstd_g = lax.rsqrt(var_g + EPS)
    mean_c = jnp.dot(gcg_ref[...], mean_g, preferred_element_type=jnp.float32)
    rstd_c = jnp.dot(gcg_ref[...], rstd_g, preferred_element_type=jnp.float32)
    a = rstd_c * gamma_ref[...]                                        # (C, 1)
    b = beta_ref[...] - mean_c * a                                     # (C, 1)
    xn = (x * a + b).astype(jnp.bfloat16)                              # (C, HWp)

    # ---- fused channel-major QKV projection --------------------------------
    # (3C, C) @ (C, HWp) -> (3C, HWp); q/k/v are 8-aligned sublane slices.
    qkv = jnp.dot(wqkv_ref[...], xn, preferred_element_type=jnp.float32)
    qkv = qkv + bqkv_ref[...]                                          # (3C, 1) bias
    qb = qkv[0:C].astype(jnp.bfloat16)                                 # (C, HWp)
    kb = qkv[C:2 * C].astype(jnp.bfloat16)                             # (C, HWp)
    vb = qkv[2 * C:3 * C].astype(jnp.bfloat16)                         # (C, HWp)

    # logits[t, s] = (q/sqrt(C))[:, t] . k[:, s]   (scale folded into Wq/bq)
    qt = qb.T                                                          # (HWp, C)
    logits = lax.dot_general(qt, kb, (((1,), (0,)), ((), ())),
                             preferred_element_type=jnp.float32)       # (HWp, HWp)
    if hwp != hw:                      # static: mask padded key columns
        col = lax.broadcasted_iota(jnp.int32, (hwp, hwp), 1)
        logits = jnp.where(col < hw, logits, -1e30)

    # ---- softmax over keys (last axis) -------------------------------------
    m = jnp.max(logits, axis=-1, keepdims=True)
    p = jnp.exp(logits - m)
    denom = jnp.sum(p, axis=-1, keepdims=True)                         # (HWp, 1)
    p = (p * pl.reciprocal(denom, approx=True)).astype(jnp.bfloat16)

    # attn[c, t] = sum_s v[c, s] * p[t, s]   -> stays channel-major (C, HWp)
    attn = lax.dot_general(vb, p, (((1,), (1,)), ((), ())),
                           preferred_element_type=jnp.float32)
    # Output projection, natural matmul in (C, HWp): (C, C) @ (C, HWp).
    y = jnp.dot(wo_ref[...], attn.astype(jnp.bfloat16),
                preferred_element_type=jnp.float32)

    # TODO(synk): for very large H*W (>~1-2k tokens) switch to a KV-tiled
    # online-softmax (flash) loop so logits/p never materialize at (HW, HW).
    o_ref[0] = (y + bo_ref[...] + x).astype(o_ref.dtype)


@jax.jit
def self_attention_block(x, params):
    """x: (B, C, H, W) float32 (NCHW, like PyTorch). Returns same shape."""
    B, C, H, W = x.shape
    HW = H * W
    HWp = ((HW + 127) // 128) * 128            # lane-dense spatial dimension
    G = NUM_GROUPS
    cs = C // G

    x2 = x.reshape(B, C, HW)
    if HWp != HW:
        x2 = jnp.pad(x2, ((0, 0), (0, 0), (0, HWp - HW)))

    # Group-indicator matrices (constant index maps -> DMA'd once).
    ch_grp = jnp.arange(C, dtype=jnp.int32) // cs
    gid = jnp.arange(G, dtype=jnp.int32)
    grp_cg = (ch_grp[:, None] == gid[None, :]).astype(jnp.float32)     # (C, G)
    grp_gc = grp_cg.T                                                  # (G, C)

    gamma = params["gamma"].reshape(C, 1).astype(jnp.float32)
    beta = params["beta"].reshape(C, 1).astype(jnp.float32)

    # Fold 1/sqrt(C) into the q rows of the fused in_proj weight and bias.
    scale = 1.0 / float(C) ** 0.5
    row_scale = jnp.concatenate([jnp.full((C,), scale, jnp.float32),
                                 jnp.ones((2 * C,), jnp.float32)])
    w_qkv = (params["w_in"] * row_scale[:, None]).astype(jnp.bfloat16)  # (3C, C)
    b_qkv = (params["b_in"] * row_scale).reshape(3 * C, 1).astype(jnp.float32)
    wo = params["w_out"].astype(jnp.bfloat16)                           # (C, C)
    bo = params["b_out"].reshape(C, 1).astype(jnp.float32)

    kernel = functools.partial(_attn_block_kernel, hw=HW, n_groups=G)
    full2 = lambda b: (0, 0)

    out = pl.pallas_call(
        kernel,
        out_shape=jax.ShapeDtypeStruct((B, C, HWp), x.dtype),
        grid_spec=pltpu.PrefetchScalarGridSpec(
            num_scalar_prefetch=0,
            grid=(B,),
            in_specs=[
                pl.BlockSpec((1, C, HWp), lambda b: (b, 0, 0)),   # x (padded)
                pl.BlockSpec((G, C), full2),                      # group reduce
                pl.BlockSpec((C, G), full2),                      # group expand
                pl.BlockSpec((C, 1), full2),                      # gamma
                pl.BlockSpec((C, 1), full2),                      # beta
                pl.BlockSpec((3 * C, C), full2),                  # fused Wqkv (bf16)
                pl.BlockSpec((3 * C, 1), full2),                  # fused b_qkv
                pl.BlockSpec((C, C), full2),                      # Wo (bf16)
                pl.BlockSpec((C, 1), full2),                      # bo
            ],
            out_specs=pl.BlockSpec((1, C, HWp), lambda b: (b, 0, 0)),
        ),
        compiler_params=pltpu.CompilerParams(
            dimension_semantics=("parallel",),
            vmem_limit_bytes=64 * 1024 * 1024),
    )(x2, grp_gc, grp_cg, gamma, beta, w_qkv, b_qkv, wo, bo)

    if HWp != HW:
        out = out[:, :, :HW]
    return out.reshape(B, C, H, W)


def _reference(x, params):
    """Plain-JAX reference mirroring the PyTorch module exactly (f32)."""
    B, C, H, W = x.shape
    g = NUM_GROUPS
    xr = x.reshape(B, g, C // g, H * W)
    mean = xr.mean(axis=(2, 3), keepdims=True)
    var = xr.var(axis=(2, 3), keepdims=True)
    xn = ((xr - mean) / jnp.sqrt(var + EPS)).reshape(B, C, H, W)
    xn = xn * params["gamma"][None, :, None, None] + params["beta"][None, :, None, None]
    t = xn.reshape(B, C, H * W).transpose(0, 2, 1)               # (B, HW, C)
    qkv = t @ params["w_in"].T + params["b_in"]
    q, k, v = jnp.split(qkv, 3, axis=-1)
    w = (q @ k.transpose(0, 2, 1)) / jnp.sqrt(jnp.float32(C))
    w = jax.nn.softmax(w, axis=-1)
    o = w @ v
    o = o @ params["w_out"].T + params["b_out"]
    o = o.transpose(0, 2, 1).reshape(B, C, H, W)
    return o + x


def _init_params(key, C):
    k1, k2, k3, k4 = jax.random.split(key, 4)
    return {
        "gamma": jnp.ones((C,), jnp.float32),                    # GroupNorm default
        "beta": jnp.zeros((C,), jnp.float32),
        "w_in": 0.05 * jax.random.normal(k1, (3 * C, C), jnp.float32),
        "b_in": 0.05 * jax.random.normal(k2, (3 * C,), jnp.float32),
        "w_out": 0.05 * jax.random.normal(k3, (C, C), jnp.float32),
        "b_out": 0.05 * jax.random.normal(k4, (C,), jnp.float32),
    }


if __name__ == "__main__":
    B, C, H, W = 2, 64, 8, 8          # C must be divisible by 32 (GroupNorm groups)
    key = jax.random.PRNGKey(0)
    kx, kp = jax.random.split(key)
    x = jax.random.normal(kx, (B, C, H, W), jnp.float32)
    params = _init_params(kp, C)

    out = jax.block_until_ready(self_attention_block(x, params))
    ref = _reference(x, params)

    assert out.shape == ref.shape
    max_err = jnp.max(jnp.abs(out - ref))
    # bf16 MXU operands (f32 accumulation) + approx reciprocal -> ~1e-3 level error
    assert jnp.allclose(out, ref, atol=1e-2, rtol=1e-2), f"max abs err {max_err}"
    print("KERNEL_OK")
</pallas_src>

<mosaic_0001>
module attributes {stable_mosaic.version = 11 : i64} {
  func.func @_attn_block_kernel(%arg0: i32, %arg1: memref<1x64x128xf32, #tpu.memory_space<vmem>>, %arg2: memref<32x64xf32, #tpu.memory_space<vmem>>, %arg3: memref<64x32xf32, #tpu.memory_space<vmem>>, %arg4: memref<64x1xf32, #tpu.memory_space<vmem>>, %arg5: memref<64x1xf32, #tpu.memory_space<vmem>>, %arg6: memref<192x64xbf16, #tpu.memory_space<vmem>>, %arg7: memref<192x1xf32, #tpu.memory_space<vmem>>, %arg8: memref<64x64xbf16, #tpu.memory_space<vmem>>, %arg9: memref<64x1xf32, #tpu.memory_space<vmem>>, %arg10: memref<1x64x128xf32, #tpu.memory_space<vmem>>) attributes {dimension_semantics = [#tpu.dimension_semantics<parallel>], iteration_bounds = array<i64: 2>, scalar_prefetch = 0 : i64, scratch_operands = 0 : i64, tpu.core_type = #tpu.core_type<tc>, window_params = [{transform_indices = @transform_0, window_bounds = array<i64: 1, 64, 128>}, {pipeline_mode = #tpu.pipeline_mode<synchronous>, transform_indices = @transform_1, window_bounds = array<i64: 32, 64>}, {pipeline_mode = #tpu.pipeline_mode<synchronous>, transform_indices = @transform_2, window_bounds = array<i64: 64, 32>}, {pipeline_mode = #tpu.pipeline_mode<synchronous>, transform_indices = @transform_3, window_bounds = array<i64: 64, 1>}, {pipeline_mode = #tpu.pipeline_mode<synchronous>, transform_indices = @transform_4, window_bounds = array<i64: 64, 1>}, {pipeline_mode = #tpu.pipeline_mode<synchronous>, transform_indices = @transform_5, window_bounds = array<i64: 192, 64>}, {pipeline_mode = #tpu.pipeline_mode<synchronous>, transform_indices = @transform_6, window_bounds = array<i64: 192, 1>}, {pipeline_mode = #tpu.pipeline_mode<synchronous>, transform_indices = @transform_7, window_bounds = array<i64: 64, 64>}, {pipeline_mode = #tpu.pipeline_mode<synchronous>, transform_indices = @transform_8, window_bounds = array<i64: 64, 1>}, {transform_indices = @transform_9, window_bounds = array<i64: 1, 64, 128>}]} {
    %c0 = arith.constant 0 : index
    %c0_0 = arith.constant 0 : index
    %c0_1 = arith.constant 0 : index
    %0 = vector.load %arg1[%c0, %c0_0, %c0_1] : memref<1x64x128xf32, #tpu.memory_space<vmem>>, vector<1x64x128xf32>
    %1 = vector.shape_cast %0 : vector<1x64x128xf32> to vector<64x128xf32>
    %cst = arith.constant dense<0.000000e+00> : vector<64xf32>
    %2 = vector.multi_reduction <add>, %1, %cst [1] : vector<64x128xf32> to vector<64xf32>
    %3 = vector.shape_cast %2 : vector<64xf32> to vector<64x1xf32>
    %4 = arith.mulf %1, %1 : vector<64x128xf32>
    %cst_2 = arith.constant dense<0.000000e+00> : vector<64xf32>
    %5 = vector.multi_reduction <add>, %4, %cst_2 [1] : vector<64x128xf32> to vector<64xf32>
    %6 = vector.shape_cast %5 : vector<64xf32> to vector<64x1xf32>
    %c0_3 = arith.constant 0 : index
    %c0_4 = arith.constant 0 : index
    %7 = vector.load %arg2[%c0_3, %c0_4] : memref<32x64xf32, #tpu.memory_space<vmem>>, vector<32x64xf32>
    %cst_5 = arith.constant dense<0.000000e+00> : vector<32x1xf32>
    %8 = tpu.matmul %7, %3, %cst_5 {dimension_numbers = #tpu.dot_dimension_numbers<[1], [0], [0], [1], [0, 0, 1, 1], [], []>} : vector<32x64xf32>, vector<64x1xf32>, vector<32x1xf32> -> vector<32x1xf32>
    %c0_6 = arith.constant 0 : index
    %c0_7 = arith.constant 0 : index
    %9 = vector.load %arg2[%c0_6, %c0_7] : memref<32x64xf32, #tpu.memory_space<vmem>>, vector<32x64xf32>
    %cst_8 = arith.constant dense<0.000000e+00> : vector<32x1xf32>
    %10 = tpu.matmul %9, %6, %cst_8 {dimension_numbers = #tpu.dot_dimension_numbers<[1], [0], [0], [1], [0, 0, 1, 1], [], []>} : vector<32x64xf32>, vector<64x1xf32>, vector<32x1xf32> -> vector<32x1xf32>
    %cst_9 = arith.constant 7.812500e-03 : f32
    %11 = vector.broadcast %cst_9 : f32 to vector<32x1xf32>
    %12 = arith.mulf %8, %11 : vector<32x1xf32>
    %cst_10 = arith.constant 7.812500e-03 : f32
    %13 = vector.broadcast %cst_10 : f32 to vector<32x1xf32>
    %14 = arith.mulf %10, %13 : vector<32x1xf32>
    %15 = arith.mulf %12, %12 : vector<32x1xf32>
    %16 = arith.subf %14, %15 : vector<32x1xf32>
    %cst_11 = arith.constant 9.99999974E-6 : f32
    %17 = vector.broadcast %cst_11 : f32 to vector<32x1xf32>
    %18 = arith.addf %16, %17 : vector<32x1xf32>
    %19 = math.rsqrt %18 : vector<32x1xf32>
    %c0_12 = arith.constant 0 : index
    %c0_13 = arith.constant 0 : index
    %20 = vector.load %arg3[%c0_12, %c0_13] : memref<64x32xf32, #tpu.memory_space<vmem>>, vector<64x32xf32>
    %cst_14 = arith.constant dense<0.000000e+00> : vector<64x1xf32>
    %21 = tpu.matmul %20, %12, %cst_14 {dimension_numbers = #tpu.dot_dimension_numbers<[1], [0], [0], [1], [0, 0, 1, 1], [], []>} : vector<64x32xf32>, vector<32x1xf32>, vector<64x1xf32> -> vector<64x1xf32>
    %c0_15 = arith.constant 0 : index
    %c0_16 = arith.constant 0 : index
    %22 = vector.load %arg3[%c0_15, %c0_16] : memref<64x32xf32, #tpu.memory_space<vmem>>, vector<64x32xf32>
    %cst_17 = arith.constant dense<0.000000e+00> : vector<64x1xf32>
    %23 = tpu.matmul %22, %19, %cst_17 {dimension_numbers = #tpu.dot_dimension_numbers<[1], [0], [0], [1], [0, 0, 1, 1], [], []>} : vector<64x32xf32>, vector<32x1xf32>, vector<64x1xf32> -> vector<64x1xf32>
    %c0_18 = arith.constant 0 : index
    %c0_19 = arith.constant 0 : index
    %24 = vector.load %arg4[%c0_18, %c0_19] : memref<64x1xf32, #tpu.memory_space<vmem>>, vector<64x1xf32>
    %25 = arith.mulf %23, %24 : vector<64x1xf32>
    %c0_20 = arith.constant 0 : index
    %c0_21 = arith.constant 0 : index
    %26 = vector.load %arg5[%c0_20, %c0_21] : memref<64x1xf32, #tpu.memory_space<vmem>>, vector<64x1xf32>
    %27 = arith.mulf %21, %25 : vector<64x1xf32>
    %28 = arith.subf %26, %27 : vector<64x1xf32>
    %29 = vector.broadcast %25 : vector<64x1xf32> to vector<64x128xf32>
    %30 = arith.mulf %1, %29 : vector<64x128xf32>
    %31 = vector.broadcast %28 : vector<64x1xf32> to vector<64x128xf32>
    %32 = arith.addf %30, %31 : vector<64x128xf32>
    %33 = arith.truncf %32 : vector<64x128xf32> to vector<64x128xbf16>
    %c0_22 = arith.constant 0 : index
    %c0_23 = arith.constant 0 : index
    %34 = vector.load %arg6[%c0_22, %c0_23] : memref<192x64xbf16, #tpu.memory_space<vmem>>, vector<192x64xbf16>
    %cst_24 = arith.constant dense<0.000000e+00> : vector<192x128xf32>
    %35 = tpu.matmul %34, %33, %cst_24 {dimension_numbers = #tpu.dot_dimension_numbers<[1], [0], [0], [1], [0, 0, 1, 1], [], []>} : vector<192x64xbf16>, vector<64x128xbf16>, vector<192x128xf32> -> vector<192x128xf32>
    %c0_25 = arith.constant 0 : index
    %c0_26 = arith.constant 0 : index
    %36 = vector.load %arg7[%c0_25, %c0_26] : memref<192x1xf32, #tpu.memory_space<vmem>>, vector<192x1xf32>
    %37 = vector.broadcast %36 : vector<192x1xf32> to vector<192x128xf32>
    %38 = arith.addf %35, %37 : vector<192x128xf32>
    %39 = vector.extract_strided_slice %38 {offsets = [0, 0], sizes = [64, 128], strides = [1, 1]} : vector<192x128xf32> to vector<64x128xf32>
    %40 = arith.truncf %39 : vector<64x128xf32> to vector<64x128xbf16>
    %41 = vector.extract_strided_slice %38 {offsets = [64, 0], sizes = [64, 128], strides = [1, 1]} : vector<192x128xf32> to vector<64x128xf32>
    %42 = arith.truncf %41 : vector<64x128xf32> to vector<64x128xbf16>
    %43 = vector.extract_strided_slice %38 {offsets = [128, 0], sizes = [64, 128], strides = [1, 1]} : vector<192x128xf32> to vector<64x128xf32>
    %44 = arith.truncf %43 : vector<64x128xf32> to vector<64x128xbf16>
    %45 = tpu.transpose %40, [1, 0] : vector<64x128xbf16> -> vector<128x64xbf16>
    %cst_27 = arith.constant dense<0.000000e+00> : vector<128x128xf32>
    %46 = tpu.matmul %45, %42, %cst_27 {dimension_numbers = #tpu.dot_dimension_numbers<[1], [0], [0], [1], [0, 0, 1, 1], [], []>} : vector<128x64xbf16>, vector<64x128xbf16>, vector<128x128xf32> -> vector<128x128xf32>
    %47 = tpu.iota {dimensions = array<i32: 1>} : vector<128x128xi32>
    %c64_i32 = arith.constant 64 : i32
    %48 = vector.broadcast %c64_i32 : i32 to vector<128x128xi32>
    %49 = arith.cmpi slt, %47, %48 : vector<128x128xi32>
    %cst_28 = arith.constant -1.000000e+30 : f32
    %50 = vector.broadcast %cst_28 : f32 to vector<128x128xf32>
    %51 = arith.select %49, %46, %50 : vector<128x128xi1>, vector<128x128xf32>
    %cst_29 = arith.constant dense<0xFF800000> : vector<128xf32>
    %52 = vector.multi_reduction <maximumf>, %51, %cst_29 [1] : vector<128x128xf32> to vector<128xf32>
    %53 = vector.shape_cast %52 : vector<128xf32> to vector<128x1xf32>
    %54 = vector.broadcast %53 : vector<128x1xf32> to vector<128x128xf32>
    %55 = arith.subf %51, %54 : vector<128x128xf32>
    %56 = math.exp %55 : vector<128x128xf32>
    %cst_30 = arith.constant dense<0.000000e+00> : vector<128xf32>
    %57 = vector.multi_reduction <add>, %56, %cst_30 [1] : vector<128x128xf32> to vector<128xf32>
    %58 = vector.shape_cast %57 : vector<128xf32> to vector<128x1xf32>
    %59 = tpu.reciprocal %58 {approx = true} : vector<128x1xf32> -> vector<128x1xf32>
    %60 = vector.broadcast %59 : vector<128x1xf32> to vector<128x128xf32>
    %61 = arith.mulf %56, %60 : vector<128x128xf32>
    %62 = arith.truncf %61 : vector<128x128xf32> to vector<128x128xbf16>
    %cst_31 = arith.constant dense<0.000000e+00> : vector<64x128xf32>
    %63 = tpu.matmul %44, %62, %cst_31 {dimension_numbers = #tpu.dot_dimension_numbers<[1], [1], [0], [0], [0, 0, 1, 0], [], []>} : vector<64x128xbf16>, vector<128x128xbf16>, vector<64x128xf32> -> vector<64x128xf32>
    %c0_32 = arith.constant 0 : index
    %c0_33 = arith.constant 0 : index
    %64 = vector.load %arg8[%c0_32, %c0_33] : memref<64x64xbf16, #tpu.memory_space<vmem>>, vector<64x64xbf16>
    %65 = arith.truncf %63 : vector<64x128xf32> to vector<64x128xbf16>
    %cst_34 = arith.constant dense<0.000000e+00> : vector<64x128xf32>
    %66 = tpu.matmul %64, %65, %cst_34 {dimension_numbers = #tpu.dot_dimension_numbers<[1], [0], [0], [1], [0, 0, 1, 1], [], []>} : vector<64x64xbf16>, vector<64x128xbf16>, vector<64x128xf32> -> vector<64x128xf32>
    %c0_35 = arith.constant 0 : index
    %c0_36 = arith.constant 0 : index
    %67 = vector.load %arg9[%c0_35, %c0_36] : memref<64x1xf32, #tpu.memory_space<vmem>>, vector<64x1xf32>
    %68 = vector.broadcast %67 : vector<64x1xf32> to vector<64x128xf32>
    %69 = arith.addf %66, %68 : vector<64x128xf32>
    %70 = arith.addf %69, %1 : vector<64x128xf32>
    %c0_37 = arith.constant 0 : index
    %c0_38 = arith.constant 0 : index
    %c0_39 = arith.constant 0 : index
    %71 = vector.load %arg10[%c0_37, %c0_38, %c0_39] : memref<1x64x128xf32, #tpu.memory_space<vmem>>, vector<1x64x128xf32>
    %72 = vector.shape_cast %71 : vector<1x64x128xf32> to vector<64x128xf32>
    %73 = vector.shape_cast %70 : vector<64x128xf32> to vector<1x64x128xf32>
    tpu.vector_store %arg10[%c0_37, %c0_38, %c0_39], %73 {strides = array<i32>} : memref<1x64x128xf32, #tpu.memory_space<vmem>>, vector<1x64x128xf32>,
    return
  }
  func.func @transform_0(%arg0: i32) -> (i32, i32, i32) {
    %c0_i32 = arith.constant 0 : i32
    %c0_i32_0 = arith.constant 0 : i32
    %c0_i32_1 = arith.constant 0 : i32
    return %arg0, %c0_i32, %c0_i32_0 : i32, i32, i32
  }
  func.func @transform_1(%arg0: i32) -> (i32, i32) {
    %c0_i32 = arith.constant 0 : i32
    %c0_i32_0 = arith.constant 0 : i32
    %c0_i32_1 = arith.constant 0 : i32
    return %c0_i32, %c0_i32_0 : i32, i32
  }
  func.func @transform_2(%arg0: i32) -> (i32, i32) {
    %c0_i32 = arith.constant 0 : i32
    %c0_i32_0 = arith.constant 0 : i32
    %c0_i32_1 = arith.constant 0 : i32
    return %c0_i32, %c0_i32_0 : i32, i32
  }
  func.func @transform_3(%arg0: i32) -> (i32, i32) {
    %c0_i32 = arith.constant 0 : i32
    %c0_i32_0 = arith.constant 0 : i32
    %c0_i32_1 = arith.constant 0 : i32
    return %c0_i32, %c0_i32_0 : i32, i32
  }
  func.func @transform_4(%arg0: i32) -> (i32, i32) {
    %c0_i32 = arith.constant 0 : i32
    %c0_i32_0 = arith.constant 0 : i32
    %c0_i32_1 = arith.constant 0 : i32
    return %c0_i32, %c0_i32_0 : i32, i32
  }
  func.func @transform_5(%arg0: i32) -> (i32, i32) {
    %c0_i32 = arith.constant 0 : i32
    %c0_i32_0 = arith.constant 0 : i32
    %c0_i32_1 = arith.constant 0 : i32
    return %c0_i32, %c0_i32_0 : i32, i32
  }
  func.func @transform_6(%arg0: i32) -> (i32, i32) {
    %c0_i32 = arith.constant 0 : i32
    %c0_i32_0 = arith.constant 0 : i32
    %c0_i32_1 = arith.constant 0 : i32
    return %c0_i32, %c0_i32_0 : i32, i32
  }
  func.func @transform_7(%arg0: i32) -> (i32, i32) {
    %c0_i32 = arith.constant 0 : i32
    %c0_i32_0 = arith.constant 0 : i32
    %c0_i32_1 = arith.constant 0 : i32
    return %c0_i32, %c0_i32_0 : i32, i32
  }
  func.func @transform_8(%arg0: i32) -> (i32, i32) {
    %c0_i32 = arith.constant 0 : i32
    %c0_i32_0 = arith.constant 0 : i32
    %c0_i32_1 = arith.constant 0 : i32
    return %c0_i32, %c0_i32_0 : i32, i32
  }
  func.func @transform_9(%arg0: i32) -> (i32, i32, i32) {
    %c0_i32 = arith.constant 0 : i32
    %c0_i32_0 = arith.constant 0 : i32
    %c0_i32_1 = arith.constant 0 : i32
    return %arg0, %c0_i32, %c0_i32_0 : i32, i32, i32
  }
}

</mosaic_0001>

<llo_original>
// kernel: mul.9
$region0: #{mul.9}
  #allocation0 [shape = 's32[1]{0}', space=sflag, size = 0x4, scoped, tag = 'scoped memory for mul.9']
  %s0 = inlined_call_operand.vmem [shape: f32[192], index: 0, kind: input, shape index: {}]
  %s1 = inlined_call_operand.vmem [shape: f32[192], index: 1, kind: input, shape index: {}]
  %s2 = inlined_call_operand.vmem [shape: f32[192], index: 2, kind: output, shape index: {}]
  %v3 = vld [vmem:[%s0] sm:$0x3]
  %v4 = vld [vmem:[%s1] sm:$0x3]
  %5 = xla_tuple %v3, %v4
  %6 = xla_tuple %5
  %v7 = vmul.f32 %v3, %v4
  %8 = xla_tuple %v7
  %9 = vst [vmem:[%s2] sm:$0x3] %v7

// kernel: self_attention_block.1
$region0: #{self_attention_block.1}
  #allocation0 [shape = 'u32[]', space=smem, size = 0x4, offset = 0x4, fixed_abs, tag = 'smem constant byte address 0x4 - core index']
  #allocation1 [shape = 'u32[144,128]{1,0:T(1,128)}', space=vmem, size = 0x12000, scoped, tag = 'internal scratch']
  %s0 = inlined_call_operand.vmem [shape: f32[2,64,128], index: 0, kind: input, shape index: {}]
  %s1 = inlined_call_operand.vmem [shape: f32[32,64], index: 1, kind: input, shape index: {}]
  %s2 = inlined_call_operand.vmem [shape: f32[64,32], index: 2, kind: input, shape index: {}]
  %s3 = inlined_call_operand.vmem [shape: f32[64,1], index: 3, kind: input, shape index: {}]
  %s4 = inlined_call_operand.vmem [shape: f32[64,1], index: 4, kind: input, shape index: {}]
  %s5 = inlined_call_operand.vmem [shape: bf16[192,64], index: 5, kind: input, shape index: {}]
  %s6 = inlined_call_operand.vmem [shape: f32[192,1], index: 6, kind: input, shape index: {}]
  %s7 = inlined_call_operand.vmem [shape: bf16[64,64], index: 7, kind: input, shape index: {}]
  %s8 = inlined_call_operand.vmem [shape: f32[64,1], index: 8, kind: input, shape index: {}]
  %s9 = inlined_call_operand.vmem [shape: f32[2,64,128], index: 9, kind: output, shape index: {}]
  %s10 = sld [smem:[#allocation0]]
  $region69: #{self_attention_block.1} parent=0
    _
  %s12 = ssub.s32 1, %s10
  %s13 = scalar_select 0, %s12, %s10
  loop: start=0, step=1, limit=4
  $region2: #{self_attention_block.1} parent=0 // loop_pre_header
    _
  $region3: #{self_attention_block.1} parent=0 // loop_header
    %s15 = sphi 0, %s19
    %p16 = scmp.ge.s32.totalorder %s15, 4
    %s25 = sphi 0, %s27
    %s28 = sphi 0, %s25
    %s29 = sphi 0, %s28
    %s45 = sphi 0, %s29
    %s49 = sphi 0, %s49
    %s51 = sphi 0, %s49
    %s52 = sphi 0, %s51
    %s66 = sphi 0, %s52
    %s70 = sphi 0, %s70
    %s72 = sphi 0, %s70
    %s73 = sphi 0, %s72
    %s87 = sphi 0, %s73
    %s91 = sphi 0, %s91
    %s93 = sphi 0, %s91
    %s94 = sphi 0, %s93
    %s108 = sphi 0, %s94
    %s112 = sphi 0, %s112
    %s114 = sphi 0, %s112
    %s115 = sphi 0, %s114
    %s129 = sphi 0, %s115
    %s133 = sphi 0, %s133
    %s135 = sphi 0, %s133
    %s136 = sphi 0, %s135
    %s150 = sphi 0, %s136
    %s154 = sphi 0, %s154
    %s156 = sphi 0, %s154
    %s157 = sphi 0, %s156
    %s171 = sphi 0, %s157
    %s175 = sphi 0, %s175
    %s177 = sphi 0, %s175
    %s178 = sphi 0, %s177
    %s192 = sphi 0, %s178
    %s196 = sphi 0, %s196
    %s198 = sphi 0, %s196
    %s199 = sphi 0, %s198
    %s213 = sphi 0, %s199
    %s219 = sphi 0, %s221
    %s222 = sphi 0, %s219
    %s223 = sphi 0, %s222
    %s239 = sphi 0, %s223
  $region4: #{self_attention_block.1} parent=0 // loop_header_branch
    %18 = sbr.rel (%p16) target = $region8
  $region5: #{self_attention_block.1} parent=0 // loop_body
    %s20 = ssub.s32 %s15, 1
    %s21 = ssub.s32 %s15, 2
    %s22 = sadd.s32 %s15, 1
    %s23 = ssub.s32 %s15, %s22
    %p24 = scmp.eq.s32.totalorder %s23, 0
    %s26 = sadd.s32 %s25, 1
    %s27 = scalar_select %p24, %s25, %s26
    %p30 = pneg %p24
    %p31 = scmp.eq.s32.totalorder %s15, 1
    %p32 = por %p30, %p31
    %p33 = scmp.ne.s32.totalorder %s25, %s28
    %p34 = scmp.eq.s32.totalorder %s15, 0
    %p35 = por %p33, %p34
    %p36 = scmp.ne.s32.totalorder %s25, %s28
    %p37 = scmp.eq.s32.totalorder %s20, 1
    %p38 = por %p36, %p37
    %p39 = scmp.ne.s32.totalorder %s28, %s29
    %p40 = scmp.eq.s32.totalorder %s20, 0
    %p41 = por %p39, %p40
    %p42 = scmp.ne.s32.totalorder %s28, %s29
    %p43 = scmp.eq.s32.totalorder %s21, 1
    %p44 = por %p42, %p43
    %p46 = scmp.ne.s32.totalorder %s29, %s45
    %p47 = scmp.eq.s32.totalorder %s21, 0
    %p48 = por %p46, %p47
    %s50 = sadd.s32 %s49, 1
    %p53 = scmp.eq.s32.totalorder %s15, 1
    %p54 = scmp.ne.s32.totalorder %s49, %s51
    %p55 = scmp.eq.s32.totalorder %s15, 0
    %p56 = por %p54, %p55
    %p57 = scmp.ne.s32.totalorder %s49, %s51
    %p58 = scmp.eq.s32.totalorder %s20, 1
    %p59 = por %p57, %p58
    %p60 = scmp.ne.s32.totalorder %s51, %s52
    %p61 = scmp.eq.s32.totalorder %s20, 0
    %p62 = por %p60, %p61
    %p63 = scmp.ne.s32.totalorder %s51, %s52
    %p64 = scmp.eq.s32.totalorder %s21, 1
    %p65 = por %p63, %p64
    %p67 = scmp.ne.s32.totalorder %s52, %s66
    %p68 = scmp.eq.s32.totalorder %s21, 0
    %p69 = por %p67, %p68
    %s71 = sadd.s32 %s70, 1
    %p74 = scmp.eq.s32.totalorder %s15, 1
    %p75 = scmp.ne.s32.totalorder %s70, %s72
    %p76 = scmp.eq.s32.totalorder %s15, 0
    %p77 = por %p75, %p76
    %p78 = scmp.ne.s32.totalorder %s70, %s72
    %p79 = scmp.eq.s32.totalorder %s20, 1
    %p80 = por %p78, %p79
    %p81 = scmp.ne.s32.totalorder %s72, %s73
    %p82 = scmp.eq.s32.totalorder %s20, 0
    %p83 = por %p81, %p82
    %p84 = scmp.ne.s32.totalorder %s72, %s73
    %p85 = scmp.eq.s32.totalorder %s21, 1
    %p86 = por %p84, %p85
    %p88 = scmp.ne.s32.totalorder %s73, %s87
    %p89 = scmp.eq.s32.totalorder %s21, 0
    %p90 = por %p88, %p89
    %s92 = sadd.s32 %s91, 1
    %p95 = scmp.eq.s32.totalorder %s15, 1
    %p96 = scmp.ne.s32.totalorder %s91, %s93
    %p97 = scmp.eq.s32.totalorder %s15, 0
    %p98 = por %p96, %p97
    %p99 = scmp.ne.s32.totalorder %s91, %s93
    %p100 = scmp.eq.s32.totalorder %s20, 1
    %p101 = por %p99, %p100
    %p102 = scmp.ne.s32.totalorder %s93, %s94
    %p103 = scmp.eq.s32.totalorder %s20, 0
    %p104 = por %p102, %p103
    %p105 = scmp.ne.s32.totalorder %s93, %s94
    %p106 = scmp.eq.s32.totalorder %s21, 1
    %p107 = por %p105, %p106
    %p109 = scmp.ne.s32.totalorder %s94, %s108
    %p110 = scmp.eq.s32.totalorder %s21, 0
    %p111 = por %p109, %p110
    %s113 = sadd.s32 %s112, 1
    %p116 = scmp.eq.s32.totalorder %s15, 1
    %p117 = scmp.ne.s32.totalorder %s112, %s114
    %p118 = scmp.eq.s32.totalorder %s15, 0
    %p119 = por %p117, %p118
    %p120 = scmp.ne.s32.totalorder %s112, %s114
    %p121 = scmp.eq.s32.totalorder %s20, 1
    %p122 = por %p120, %p121
    %p123 = scmp.ne.s32.totalorder %s114, %s115
    %p124 = scmp.eq.s32.totalorder %s20, 0
    %p125 = por %p123, %p124
    %p126 = scmp.ne.s32.totalorder %s114, %s115
    %p127 = scmp.eq.s32.totalorder %s21, 1
    %p128 = por %p126, %p127
    %p130 = scmp.ne.s32.totalorder %s115, %s129
    %p131 = scmp.eq.s32.totalorder %s21, 0
    %p132 = por %p130, %p131
    %s134 = sadd.s32 %s133, 1
    %p137 = scmp.eq.s32.totalorder %s15, 1
    %p138 = scmp.ne.s32.totalorder %s133, %s135
    %p139 = scmp.eq.s32.totalorder %s15, 0
    %p140 = por %p138, %p139
    %p141 = scmp.ne.s32.totalorder %s133, %s135
    %p142 = scmp.eq.s32.totalorder %s20, 1
    %p143 = por %p141, %p142
    %p144 = scmp.ne.s32.totalorder %s135, %s136
    %p145 = scmp.eq.s32.totalorder %s20, 0
    %p146 = por %p144, %p145
    %p147 = scmp.ne.s32.totalorder %s135, %s136
    %p148 = scmp.eq.s32.totalorder %s21, 1
    %p149 = por %p147, %p148
    %p151 = scmp.ne.s32.totalorder %s136, %s150
    %p152 = scmp.eq.s32.totalorder %s21, 0
    %p153 = por %p151, %p152
    %s155 = sadd.s32 %s154, 1
    %p158 = scmp.eq.s32.totalorder %s15, 1
    %p159 = scmp.ne.s32.totalorder %s154, %s156
    %p160 = scmp.eq.s32.totalorder %s15, 0
    %p161 = por %p159, %p160
    %p162 = scmp.ne.s32.totalorder %s154, %s156
    %p163 = scmp.eq.s32.totalorder %s20, 1
    %p164 = por %p162, %p163
    %p165 = scmp.ne.s32.totalorder %s156, %s157
    %p166 = scmp.eq.s32.totalorder %s20, 0
    %p167 = por %p165, %p166
    %p168 = scmp.ne.s32.totalorder %s156, %s157
    %p169 = scmp.eq.s32.totalorder %s21, 1
    %p170 = por %p168, %p169
    %p172 = scmp.ne.s32.totalorder %s157, %s171
    %p173 = scmp.eq.s32.totalorder %s21, 0
    %p174 = por %p172, %p173
    %s176 = sadd.s32 %s175, 1
    %p179 = scmp.eq.s32.totalorder %s15, 1
    %p180 = scmp.ne.s32.totalorder %s175, %s177
    %p181 = scmp.eq.s32.totalorder %s15, 0
    %p182 = por %p180, %p181
    %p183 = scmp.ne.s32.totalorder %s175, %s177
    %p184 = scmp.eq.s32.totalorder %s20, 1
    %p185 = por %p183, %p184
    %p186 = scmp.ne.s32.totalorder %s177, %s178
    %p187 = scmp.eq.s32.totalorder %s20, 0
    %p188 = por %p186, %p187
    %p189 = scmp.ne.s32.totalorder %s177, %s178
    %p190 = scmp.eq.s32.totalorder %s21, 1
    %p191 = por %p189, %p190
    %p193 = scmp.ne.s32.totalorder %s178, %s192
    %p194 = scmp.eq.s32.totalorder %s21, 0
    %p195 = por %p193, %p194
    %s197 = sadd.s32 %s196, 1
    %p200 = scmp.eq.s32.totalorder %s15, 1
    %p201 = scmp.ne.s32.totalorder %s196, %s198
    %p202 = scmp.eq.s32.totalorder %s15, 0
    %p203 = por %p201, %p202
    %p204 = scmp.ne.s32.totalorder %s196, %s198
    %p205 = scmp.eq.s32.totalorder %s20, 1
    %p206 = por %p204, %p205
    %p207 = scmp.ne.s32.totalorder %s198, %s199
    %p208 = scmp.eq.s32.totalorder %s20, 0
    %p209 = por %p207, %p208
    %p210 = scmp.ne.s32.totalorder %s198, %s199
    %p211 = scmp.eq.s32.totalorder %s21, 1
    %p212 = por %p210, %p211
    %p214 = scmp.ne.s32.totalorder %s199, %s213
    %p215 = scmp.eq.s32.totalorder %s21, 0
    %p216 = por %p214, %p215
    %s217 = ssub.s32 %s15, %s22
    %p218 = scmp.eq.s32.totalorder %s217, 0
    %s220 = sadd.s32 %s219, 1
    %s221 = scalar_select %p218, %s219, %s220
    %p224 = pneg %p218
    %p225 = scmp.eq.s32.totalorder %s15, 1
    %p226 = por %p224, %p225
    %p227 = scmp.ne.s32.totalorder %s219, %s222
    %p228 = scmp.eq.s32.totalorder %s15, 0
    %p229 = por %p227, %p228
    %p230 = scmp.ne.s32.totalorder %s219, %s222
    %p231 = scmp.eq.s32.totalorder %s20, 1
    %p232 = por %p230, %p231
    %p233 = scmp.ne.s32.totalorder %s222, %s223
    %p234 = scmp.eq.s32.totalorder %s20, 0
    %p235 = por %p233, %p234
    %p236 = scmp.ne.s32.totalorder %s222, %s223
    %p237 = scmp.eq.s32.totalorder %s21, 1
    %p238 = por %p236, %p237
    %p240 = scmp.ne.s32.totalorder %s223, %s239
    %p241 = scmp.eq.s32.totalorder %s21, 0
    %p242 = por %p240, %p241
    %p243 = scmp.le.s32.totalorder 1, %s15
    %p244 = scmp.lt.s32.totalorder %s15, 3
    %p245 = pnand %p243, %p244
    %p246 = pneg %p245
    // Predicated region
    $region9: #{self_attention_block.1} parent=5 // pred_check
      _
    $region10: #{self_attention_block.1} parent=5 // pred_check_branch
      %248 = sbr.rel (%p245) target = $region12
    $region11: #{self_attention_block.1} parent=5 // pred_region
      %s249 = ssub.s32 %s15, 1
      // Predicated region
      $region13: #{self_attention_block.1} parent=11 // pred_check
        %p250 = pneg %p62
      $region14: #{self_attention_block.1} parent=11 // pred_check_branch
        %252 = sbr.rel (%p250) target = $region16
      $region15: #{self_attention_block.1} parent=11 // pred_region
        _
      $region16: #{self_attention_block.1} parent=11 // pred_fallthru
        _
      // Predicated region
      $region17: #{self_attention_block.1} parent=11 // pred_check
        %p253 = pneg %p83
      $region18: #{self_attention_block.1} parent=11 // pred_check_branch
        %255 = sbr.rel (%p253) target = $region20
      $region19: #{self_attention_block.1} parent=11 // pred_region
        _
      $region20: #{self_attention_block.1} parent=11 // pred_fallthru
        _
      // Predicated region
      $region21: #{self_attention_block.1} parent=11 // pred_check
        %p256 = pneg %p104
      $region22: #{self_attention_block.1} parent=11 // pred_check_branch
        %258 = sbr.rel (%p256) target = $region24
      $region23: #{self_attention_block.1} parent=11 // pred_region
        _
      $region24: #{self_attention_block.1} parent=11 // pred_fallthru
        _
      // Predicated region
      $region25: #{self_attention_block.1} parent=11 // pred_check
        %p259 = pneg %p125
      $region26: #{self_attention_block.1} parent=11 // pred_check_branch
        %261 = sbr.rel (%p259) target = $region28
      $region27: #{self_attention_block.1} parent=11 // pred_region
        _
      $region28: #{self_attention_block.1} parent=11 // pred_fallthru
        _
      // Predicated region
      $region29: #{self_attention_block.1} parent=11 // pred_check
        %p262 = pneg %p146
      $region30: #{self_attention_block.1} parent=11 // pred_check_branch
        %264 = sbr.rel (%p262) target = $region32
      $region31: #{self_attention_block.1} parent=11 // pred_region
        _
      $region32: #{self_attention_block.1} parent=11 // pred_fallthru
        _
      // Predicated region
      $region33: #{self_attention_block.1} parent=11 // pred_check
        %p265 = pneg %p167
      $region34: #{self_attention_block.1} parent=11 // pred_check_branch
        %267 = sbr.rel (%p265) target = $region36
      $region35: #{self_attention_block.1} parent=11 // pred_region
        _
      $region36: #{self_attention_block.1} parent=11 // pred_fallthru
        _
      // Predicated region
      $region37: #{self_attention_block.1} parent=11 // pred_check
        %p268 = pneg %p188
      $region38: #{self_attention_block.1} parent=11 // pred_check_branch
        %270 = sbr.rel (%p268) target = $region40
      $region39: #{self_attention_block.1} parent=11 // pred_region
        _
      $region40: #{self_attention_block.1} parent=11 // pred_fallthru
        _
      // Predicated region
      $region41: #{self_attention_block.1} parent=11 // pred_check
        %p271 = pneg %p209
      $region42: #{self_attention_block.1} parent=11 // pred_check_branch
        %273 = sbr.rel (%p271) target = $region44
      $region43: #{self_attention_block.1} parent=11 // pred_region
        _
      $region44: #{self_attention_block.1} parent=11 // pred_fallthru
        _
    $region12: #{self_attention_block.1} parent=5 // pred_fallthru
      _
    %p274 = scmp.lt.s32.totalorder %s15, 2
    // Predicated region
    $region45: #{self_attention_block.1} parent=5 // pred_check
      %p275 = pneg %p274
    $region46: #{self_attention_block.1} parent=5 // pred_check_branch
      %277 = sbr.rel (%p275) target = $region48
    $region47: #{self_attention_block.1} parent=5 // pred_region
      // Predicated region
      $region49: #{self_attention_block.1} parent=47 // pred_check
        %p278 = pneg %p35
      $region50: #{self_attention_block.1} parent=47 // pred_check_branch
        %280 = sbr.rel (%p278) target = $region52
      $region51: #{self_attention_block.1} parent=47 // pred_region
        %p281 = scmp.lt.s32.totalorder %s15, 1
        %s282 = scalar_select %p281, %s15, 1
        %s283 = smul.addr %s282, 8
        %s284 = smul.addr %s283, 8
        %s285 = scalar_lea.vmem %s0, %s284
      $region52: #{self_attention_block.1} parent=47 // pred_fallthru
        _
    $region48: #{self_attention_block.1} parent=5 // pred_fallthru
      _
    %p286 = scmp.le.s32.totalorder 1, %s15
    %p287 = scmp.lt.s32.totalorder %s15, 3
    %p288 = pnand %p286, %p287
    %p289 = pneg %p288
    // Predicated region
    $region53: #{self_attention_block.1} parent=5 // pred_check
      _
    $region54: #{self_attention_block.1} parent=5 // pred_check_branch
      %291 = sbr.rel (%p288) target = $region56
    $region55: #{self_attention_block.1} parent=5 // pred_region
      %s292 = ssub.s32 %s15, 1
      %p293 = scmp.lt.s32.totalorder %s20, 1
      %s294 = scalar_select %p293, %s20, 1
      %s295 = smul.addr %s294, 8
      %s296 = smul.addr %s295, 8
      %s297 = scalar_lea.vmem %s0, %s296
      %p298 = pneg %p41
      %p299 = pneg %p38
      %p300 = pneg %p62
      %p301 = pneg %p59
      %p302 = pneg %p83
      %p303 = pneg %p80
      %p304 = pneg %p104
      %p305 = pneg %p101
      %p306 = pneg %p125
      %p307 = pneg %p122
      %p308 = pneg %p146
      %p309 = pneg %p143
      %p310 = pneg %p167
      %p311 = pneg %p164
      %p312 = pneg %p188
      %p313 = pneg %p185
      %p314 = pneg %p209
      %p315 = pneg %p206
      %p316 = pneg %p235
      %p317 = pneg %p232
      %p318 = scmp.lt.s32.totalorder %s20, 1
      %s319 = scalar_select %p318, %s20, 1
      %s320 = smul.addr %s319, 8
      %s321 = smul.addr %s320, 8
      %s322 = scalar_lea.vmem %s9, %s321
      %p323 = scmp.lt.s32.totalorder %s20, 1
      %s324 = scalar_select %p323, %s20, 1
      %s325 = smul.addr %s324, 8
      %s326 = smul.addr %s325, 8
      %s327 = scalar_lea.vmem %s0, %s326
      %p328 = scmp.lt.s32.totalorder %s20, 1
      %s329 = scalar_select %p328, %s20, 1
      %s330 = smul.addr %s329, 8
      %s331 = smul.addr %s330, 8
      %s332 = scalar_lea.vmem %s9, %s331
      %v334 = vld [vmem:[%s327] sm:$0xff]
      %v335 = vld [vmem:[%s327 + $0x8] sm:$0xff]
      %v336 = vld [vmem:[%s327 + $0x10] sm:$0xff]
      %v337 = vld [vmem:[%s327 + $0x18] sm:$0xff]
      %v338 = vld [vmem:[%s327 + $0x20] sm:$0xff]
      %v339 = vld [vmem:[%s327 + $0x28] sm:$0xff]
      %v340 = vld [vmem:[%s327 + $0x30] sm:$0xff]
      %v341 = vld [vmem:[%s327 + $0x38] sm:$0xff]
      %342 = vadd.xlane.f32.xlu0 %v334
      %v343 = vpop.xlane.xlu0 %342
      %344 = vadd.xlane.f32.xlu0 %v335
      %v345 = vpop.xlane.xlu0 %344
      %346 = vadd.xlane.f32.xlu0 %v336
      %v347 = vpop.xlane.xlu0 %346
      %348 = vadd.xlane.f32.xlu0 %v337
      %v349 = vpop.xlane.xlu0 %348
      %350 = vadd.xlane.f32.xlu0 %v338
      %v351 = vpop.xlane.xlu0 %350
      %352 = vadd.xlane.f32.xlu0 %v339
      %v353 = vpop.xlane.xlu0 %352
      %354 = vadd.xlane.f32.xlu0 %v340
      %v355 = vpop.xlane.xlu0 %354
      %356 = vadd.xlane.f32.xlu0 %v341
      %v357 = vpop.xlane.xlu0 %356
      %v358 = vmul.f32 %v334, %v334
      %v359 = vmul.f32 %v335, %v335
      %v360 = vmul.f32 %v336, %v336
      %v361 = vmul.f32 %v337, %v337
      %v362 = vmul.f32 %v338, %v338
      %v363 = vmul.f32 %v339, %v339
      %v364 = vmul.f32 %v340, %v340
      %v365 = vmul.f32 %v341, %v341
      %366 = vadd.xlane.f32.xlu0 %v358
      %v367 = vpop.xlane.xlu0 %366
      %368 = vadd.xlane.f32.xlu0 %v359
      %v369 = vpop.xlane.xlu0 %368
      %370 = vadd.xlane.f32.xlu0 %v360
      %v371 = vpop.xlane.xlu0 %370
      %372 = vadd.xlane.f32.xlu0 %v361
      %v373 = vpop.xlane.xlu0 %372
      %374 = vadd.xlane.f32.xlu0 %v362
      %v375 = vpop.xlane.xlu0 %374
      %376 = vadd.xlane.f32.xlu0 %v363
      %v377 = vpop.xlane.xlu0 %376
      %378 = vadd.xlane.f32.xlu0 %v364
      %v379 = vpop.xlane.xlu0 %378
      %380 = vadd.xlane.f32.xlu0 %v365
      %v381 = vpop.xlane.xlu0 %380
      %v382 = vld [vmem:[%s1] sm:$0xff]
      %v383 = vld [vmem:[%s1 + $0x8] sm:$0xff]
      %v384 = vld [vmem:[%s1 + $0x10] sm:$0xff]
      %v385 = vld [vmem:[%s1 + $0x18] sm:$0xff]
      %vm386 = vcmask 523264
      %v388 = vsel %vm386, %v382, 0
      %v391 = vsel %vm386, %v383, 0
      %v394 = vsel %vm386, %v384, 0
      %v397 = vsel %vm386, %v385, 0
      %399 = vmatprep.subr.mxu0 0.0
      %400 = vmatpush1.msra.mxu0 0.0
      %401 = vmatprep.subr.mxu0 0.0
      %402 = vmatpush1.msra.mxu0 0.0
      %403 = vmatprep.subr.mxu0 0.0
      %404 = vmatpush1.msra.mxu0 0.0
      %405 = vmatprep.subr.mxu0 0.0
      %406 = vmatpush1.msra.mxu0 0.0
      %407 = vmatprep.subr.mxu0 0.0
      %408 = vmatpush1.msra.mxu0 0.0
      %409 = vmatprep.subr.mxu0 0.0
      %410 = vmatpush1.msra.mxu0 0.0
      %411 = vmatprep.subr.mxu0 0.0
      %412 = vmatpush1.msra.mxu0 0.0
      %413 = vmatprep.subr.mxu0 0.0
      %414 = vmatpush1.msra.mxu0 0.0
      %415 = vmatprep.subr.mxu0 0.0
      %416 = vmatpush1.msra.mxu0 %v357
      %417 = vmatprep.subr.mxu0 0.0
      %418 = vmatpush1.msra.mxu0 %v355
      %419 = vmatprep.subr.mxu0 0.0
      %420 = vmatpush1.msra.mxu0 %v353
      %421 = vmatprep.subr.mxu0 0.0
      %422 = vmatpush1.msra.mxu0 %v351
      %423 = vmatprep.subr.mxu0 0.0
      %424 = vmatpush1.msra.mxu0 %v349
      %425 = vmatprep.subr.mxu0 0.0
      %426 = vmatpush1.msra.mxu0 %v347
      %427 = vmatprep.subr.mxu0 0.0
      %428 = vmatpush1.msra.mxu0 %v345
      %429 = vmatprep.subr.mxu0 0.0
      %430 = vmatpush1.msra.mxu0 %v343
      %431 = vmatprep.subr.mxu0 0.0
      %432 = vmatpush2.msra.mxu0 0.0
      %433 = vmatprep.subr.mxu0 0.0
      %434 = vmatpush2.msra.mxu0 0.0
      %435 = vmatprep.subr.mxu0 0.0
      %436 = vmatpush2.msra.mxu0 0.0
      %437 = vmatprep.subr.mxu0 0.0
      %438 = vmatpush2.msra.mxu0 0.0
      %439 = vmatprep.subr.mxu0 0.0
      %440 = vmatpush2.msra.mxu0 0.0
      %441 = vmatprep.subr.mxu0 0.0
      %442 = vmatpush2.msra.mxu0 0.0
      %443 = vmatprep.subr.mxu0 0.0
      %444 = vmatpush2.msra.mxu0 0.0
      %445 = vmatprep.subr.mxu0 0.0
      %446 = vmatpush2.msra.mxu0 0.0
      %447 = vmatprep.subr.mxu0 0.0
      %448 = vmatpush2.msra.mxu0 0.0
      %449 = vmatprep.subr.mxu0 0.0
      %450 = vmatpush2.msra.mxu0 0.0
      %451 = vmatprep.subr.mxu0 0.0
      %452 = vmatpush2.msra.mxu0 0.0
      %453 = vmatprep.subr.mxu0 0.0
      %454 = vmatpush2.msra.mxu0 0.0
      %455 = vmatprep.subr.mxu0 0.0
      %456 = vmatpush2.msra.mxu0 0.0
      %457 = vmatprep.subr.mxu0 0.0
      %458 = vmatpush2.msra.mxu0 0.0
      %459 = vmatprep.subr.mxu0 0.0
      %460 = vmatpush2.msra.mxu0 0.0
      %461 = vmatprep.subr.mxu0 0.0
      %462 = vmatpush2.msra.mxu0 0.0
      %463 = vmatprep.mubr.f32.mxu0 0.0
      %464 = vmatmul.mubr.f32.gmra.mxu0 %v388
      %v465 = vpop.f32.mrf.mxu0
      %v466 = vadd.f32 0.0, %v465
      %v467 = vpop.f32.mrf.mxu0
      %468 = vmatprep.mubr.f32.mxu0 0.0
      %469 = vmatmul.mubr.f32.gmra.mxu0 %v391
      %v470 = vpop.f32.mrf.mxu0
      %v471 = vadd.f32 0.0, %v470
      %v472 = vpop.f32.mrf.mxu0
      %473 = vmatprep.mubr.f32.mxu0 0.0
      %474 = vmatmul.mubr.f32.gmra.mxu0 %v394
      %v475 = vpop.f32.mrf.mxu0
      %v476 = vadd.f32 0.0, %v475
      %v477 = vpop.f32.mrf.mxu0
      %478 = vmatprep.mubr.f32.mxu0 0.0
      %479 = vmatmul.mubr.f32.gmra.mxu0 %v397
      %v480 = vpop.f32.mrf.mxu0
      %v481 = vadd.f32 0.0, %v480
      %v482 = vpop.f32.mrf.mxu0
      %483 = vdwg.mxu0
      %484 = vmatprep.subr.mxu0 0.0
      %485 = vmatpush1.msra.mxu0 0.0
      %486 = vmatprep.subr.mxu0 0.0
      %487 = vmatpush1.msra.mxu0 0.0
      %488 = vmatprep.subr.mxu0 0.0
      %489 = vmatpush1.msra.mxu0 0.0
      %490 = vmatprep.subr.mxu0 0.0
      %491 = vmatpush1.msra.mxu0 0.0
      %492 = vmatprep.subr.mxu0 0.0
      %493 = vmatpush1.msra.mxu0 0.0
      %494 = vmatprep.subr.mxu0 0.0
      %495 = vmatpush1.msra.mxu0 0.0
      %496 = vmatprep.subr.mxu0 0.0
      %497 = vmatpush1.msra.mxu0 0.0
      %498 = vmatprep.subr.mxu0 0.0
      %499 = vmatpush1.msra.mxu0 0.0
      %500 = vmatprep.subr.mxu0 0.0
      %501 = vmatpush1.msra.mxu0 %v381
      %502 = vmatprep.subr.mxu0 0.0
      %503 = vmatpush1.msra.mxu0 %v379
      %504 = vmatprep.subr.mxu0 0.0
      %505 = vmatpush1.msra.mxu0 %v377
      %506 = vmatprep.subr.mxu0 0.0
      %507 = vmatpush1.msra.mxu0 %v375
      %508 = vmatprep.subr.mxu0 0.0
      %509 = vmatpush1.msra.mxu0 %v373
      %510 = vmatprep.subr.mxu0 0.0
      %511 = vmatpush1.msra.mxu0 %v371
      %512 = vmatprep.subr.mxu0 0.0
      %513 = vmatpush1.msra.mxu0 %v369
      %514 = vmatprep.subr.mxu0 0.0
      %515 = vmatpush1.msra.mxu0 %v367
      %516 = vmatprep.subr.mxu0 0.0
      %517 = vmatpush2.msra.mxu0 0.0
      %518 = vmatprep.subr.mxu0 0.0
      %519 = vmatpush2.msra.mxu0 0.0
      %520 = vmatprep.subr.mxu0 0.0
      %521 = vmatpush2.msra.mxu0 0.0
      %522 = vmatprep.subr.mxu0 0.0
      %523 = vmatpush2.msra.mxu0 0.0
      %524 = vmatprep.subr.mxu0 0.0
      %525 = vmatpush2.msra.mxu0 0.0
      %526 = vmatprep.subr.mxu0 0.0
      %527 = vmatpush2.msra.mxu0 0.0
      %528 = vmatprep.subr.mxu0 0.0
      %529 = vmatpush2.msra.mxu0 0.0
      %530 = vmatprep.subr.mxu0 0.0
      %531 = vmatpush2.msra.mxu0 0.0
      %532 = vmatprep.subr.mxu0 0.0
      %533 = vmatpush2.msra.mxu0 0.0
      %534 = vmatprep.subr.mxu0 0.0
      %535 = vmatpush2.msra.mxu0 0.0
      %536 = vmatprep.subr.mxu0 0.0
      %537 = vmatpush2.msra.mxu0 0.0
      %538 = vmatprep.subr.mxu0 0.0
      %539 = vmatpush2.msra.mxu0 0.0
      %540 = vmatprep.subr.mxu0 0.0
      %541 = vmatpush2.msra.mxu0 0.0
      %542 = vmatprep.subr.mxu0 0.0
      %543 = vmatpush2.msra.mxu0 0.0
      %544 = vmatprep.subr.mxu0 0.0
      %545 = vmatpush2.msra.mxu0 0.0
      %546 = vmatprep.subr.mxu0 0.0
      %547 = vmatpush2.msra.mxu0 0.0
      %548 = vmatprep.mubr.f32.mxu0 0.0
      %549 = vmatmul.mubr.f32.gmra.mxu0 %v388
      %v550 = vpop.f32.mrf.mxu0
      %v551 = vadd.f32 0.0, %v550
      %v552 = vpop.f32.mrf.mxu0
      %553 = vmatprep.mubr.f32.mxu0 0.0
      %554 = vmatmul.mubr.f32.gmra.mxu0 %v391
      %v555 = vpop.f32.mrf.mxu0
      %v556 = vadd.f32 0.0, %v555
      %v557 = vpop.f32.mrf.mxu0
      %558 = vmatprep.mubr.f32.mxu0 0.0
      %559 = vmatmul.mubr.f32.gmra.mxu0 %v394
      %v560 = vpop.f32.mrf.mxu0
      %v561 = vadd.f32 0.0, %v560
      %v562 = vpop.f32.mrf.mxu0
      %563 = vmatprep.mubr.f32.mxu0 0.0
      %564 = vmatmul.mubr.f32.gmra.mxu0 %v397
      %v565 = vpop.f32.mrf.mxu0
      %v566 = vadd.f32 0.0, %v565
      %v567 = vpop.f32.mrf.mxu0
      %568 = vdwg.mxu0
      %v569 = vmul.f32 %v466, 0.0078125
      %v570 = vmul.f32 %v471, 0.0078125
      %v571 = vmul.f32 %v476, 0.0078125
      %v572 = vmul.f32 %v481, 0.0078125
      %v573 = vmul.f32 %v551, 0.0078125
      %v574 = vmul.f32 %v556, 0.0078125
      %v575 = vmul.f32 %v561, 0.0078125
      %v576 = vmul.f32 %v566, 0.0078125
      %v577 = vmul.f32 %v569, %v569
      %v578 = vmul.f32 %v570, %v570
      %v579 = vmul.f32 %v571, %v571
      %v580 = vmul.f32 %v572, %v572
      %v581 = vsub.f32 %v573, %v577
      %v582 = vsub.f32 %v574, %v578
      %v583 = vsub.f32 %v575, %v579
      %v584 = vsub.f32 %v576, %v580
      %v585 = vadd.f32 %v581, 1e-05
      %v586 = vadd.f32 %v582, 1e-05
      %v587 = vadd.f32 %v583, 1e-05
      %v588 = vadd.f32 %v584, 1e-05
      %v589 = vrsqrt.pop %v585
      %v590 = vrsqrt.pop %v586
      %v591 = vrsqrt.pop %v587
      %v592 = vrsqrt.pop %v588
      %v593 = vld [vmem:[%s2] sm:$0xff]
      %v594 = vld [vmem:[%s2 + $0x8] sm:$0xff]
      %v595 = vld [vmem:[%s2 + $0x10] sm:$0xff]
      %v596 = vld [vmem:[%s2 + $0x18] sm:$0xff]
      %v597 = vld [vmem:[%s2 + $0x20] sm:$0xff]
      %v598 = vld [vmem:[%s2 + $0x28] sm:$0xff]
      %v599 = vld [vmem:[%s2 + $0x30] sm:$0xff]
      %v600 = vld [vmem:[%s2 + $0x38] sm:$0xff]
      %vm601 = vcmask 261120
      %v603 = vsel %vm601, %v593, 0
      %v606 = vsel %vm601, %v594, 0
      %v609 = vsel %vm601, %v595, 0
      %v612 = vsel %vm601, %v596, 0
      %v615 = vsel %vm601, %v597, 0
      %v618 = vsel %vm601, %v598, 0
      %v621 = vsel %vm601, %v599, 0
      %v624 = vsel %vm601, %v600, 0
      %626 = vmatprep.subr.mxu0 0.0
      %627 = vmatpush1.msra.mxu0 0.0
      %628 = vmatprep.subr.mxu0 0.0
      %629 = vmatpush1.msra.mxu0 0.0
      %630 = vmatprep.subr.mxu0 0.0
      %631 = vmatpush1.msra.mxu0 0.0
      %632 = vmatprep.subr.mxu0 0.0
      %633 = vmatpush1.msra.mxu0 0.0
      %634 = vmatprep.subr.mxu0 0.0
      %635 = vmatpush1.msra.mxu0 0.0
      %636 = vmatprep.subr.mxu0 0.0
      %637 = vmatpush1.msra.mxu0 0.0
      %638 = vmatprep.subr.mxu0 0.0
      %639 = vmatpush1.msra.mxu0 0.0
      %640 = vmatprep.subr.mxu0 0.0
      %641 = vmatpush1.msra.mxu0 0.0
      %642 = vmatprep.subr.mxu0 0.0
      %643 = vmatpush1.msra.mxu0 0.0
      %644 = vmatprep.subr.mxu0 0.0
      %645 = vmatpush1.msra.mxu0 0.0
      %646 = vmatprep.subr.mxu0 0.0
      %647 = vmatpush1.msra.mxu0 0.0
      %648 = vmatprep.subr.mxu0 0.0
      %649 = vmatpush1.msra.mxu0 0.0
      %650 = vmatprep.subr.mxu0 0.0
      %651 = vmatpush1.msra.mxu0 %v572
      %652 = vmatprep.subr.mxu0 0.0
      %653 = vmatpush1.msra.mxu0 %v571
      %654 = vmatprep.subr.mxu0 0.0
      %655 = vmatpush1.msra.mxu0 %v570
      %656 = vmatprep.subr.mxu0 0.0
      %657 = vmatpush1.msra.mxu0 %v569
      %658 = vmatprep.subr.mxu0 0.0
      %659 = vmatpush2.msra.mxu0 0.0
      %660 = vmatprep.subr.mxu0 0.0
      %661 = vmatpush2.msra.mxu0 0.0
      %662 = vmatprep.subr.mxu0 0.0
      %663 = vmatpush2.msra.mxu0 0.0
      %664 = vmatprep.subr.mxu0 0.0
      %665 = vmatpush2.msra.mxu0 0.0
      %666 = vmatprep.subr.mxu0 0.0
      %667 = vmatpush2.msra.mxu0 0.0
      %668 = vmatprep.subr.mxu0 0.0
      %669 = vmatpush2.msra.mxu0 0.0
      %670 = vmatprep.subr.mxu0 0.0
      %671 = vmatpush2.msra.mxu0 0.0
      %672 = vmatprep.subr.mxu0 0.0
      %673 = vmatpush2.msra.mxu0 0.0
      %674 = vmatprep.subr.mxu0 0.0
      %675 = vmatpush2.msra.mxu0 0.0
      %676 = vmatprep.subr.mxu0 0.0
      %677 = vmatpush2.msra.mxu0 0.0
      %678 = vmatprep.subr.mxu0 0.0
      %679 = vmatpush2.msra.mxu0 0.0
      %680 = vmatprep.subr.mxu0 0.0
      %681 = vmatpush2.msra.mxu0 0.0
      %682 = vmatprep.subr.mxu0 0.0
      %683 = vmatpush2.msra.mxu0 0.0
      %684 = vmatprep.subr.mxu0 0.0
      %685 = vmatpush2.msra.mxu0 0.0
      %686 = vmatprep.subr.mxu0 0.0
      %687 = vmatpush2.msra.mxu0 0.0
      %688 = vmatprep.subr.mxu0 0.0
      %689 = vmatpush2.msra.mxu0 0.0
      %690 = vmatprep.mubr.f32.mxu0 0.0
      %691 = vmatmul.mubr.f32.gmra.mxu0 %v603
      %v692 = vpop.f32.mrf.mxu0
      %v693 = vadd.f32 0.0, %v692
      %v694 = vpop.f32.mrf.mxu0
      %695 = vmatprep.mubr.f32.mxu0 0.0
      %696 = vmatmul.mubr.f32.gmra.mxu0 %v606
      %v697 = vpop.f32.mrf.mxu0
      %v698 = vadd.f32 0.0, %v697
      %v699 = vpop.f32.mrf.mxu0
      %700 = vmatprep.mubr.f32.mxu0 0.0
      %701 = vmatmul.mubr.f32.gmra.mxu0 %v609
      %v702 = vpop.f32.mrf.mxu0
      %v703 = vadd.f32 0.0, %v702
      %v704 = vpop.f32.mrf.mxu0
      %705 = vmatprep.mubr.f32.mxu0 0.0
      %706 = vmatmul.mubr.f32.gmra.mxu0 %v612
      %v707 = vpop.f32.mrf.mxu0
      %v708 = vadd.f32 0.0, %v707
      %v709 = vpop.f32.mrf.mxu0
      %710 = vmatprep.mubr.f32.mxu0 0.0
      %711 = vmatmul.mubr.f32.gmra.mxu0 %v615
      %v712 = vpop.f32.mrf.mxu0
      %v713 = vadd.f32 0.0, %v712
      %v714 = vpop.f32.mrf.mxu0
      %715 = vmatprep.mubr.f32.mxu0 0.0
      %716 = vmatmul.mubr.f32.gmra.mxu0 %v618
      %v717 = vpop.f32.mrf.mxu0
      %v718 = vadd.f32 0.0, %v717
      %v719 = vpop.f32.mrf.mxu0
      %720 = vmatprep.mubr.f32.mxu0 0.0
      %721 = vmatmul.mubr.f32.gmra.mxu0 %v621
      %v722 = vpop.f32.mrf.mxu0
      %v723 = vadd.f32 0.0, %v722
      %v724 = vpop.f32.mrf.mxu0
      %725 = vmatprep.mubr.f32.mxu0 0.0
      %726 = vmatmul.mubr.f32.gmra.mxu0 %v624
      %v727 = vpop.f32.mrf.mxu0
      %v728 = vadd.f32 0.0, %v727
      %v729 = vpop.f32.mrf.mxu0
      %730 = vdwg.mxu0
      %731 = vmatprep.subr.mxu0 0.0
      %732 = vmatpush1.msra.mxu0 0.0
      %733 = vmatprep.subr.mxu0 0.0
      %734 = vmatpush1.msra.mxu0 0.0
      %735 = vmatprep.subr.mxu0 0.0
      %736 = vmatpush1.msra.mxu0 0.0
      %737 = vmatprep.subr.mxu0 0.0
      %738 = vmatpush1.msra.mxu0 0.0
      %739 = vmatprep.subr.mxu0 0.0
      %740 = vmatpush1.msra.mxu0 0.0
      %741 = vmatprep.subr.mxu0 0.0
      %742 = vmatpush1.msra.mxu0 0.0
      %743 = vmatprep.subr.mxu0 0.0
      %744 = vmatpush1.msra.mxu0 0.0
      %745 = vmatprep.subr.mxu0 0.0
      %746 = vmatpush1.msra.mxu0 0.0
      %747 = vmatprep.subr.mxu0 0.0
      %748 = vmatpush1.msra.mxu0 0.0
      %749 = vmatprep.subr.mxu0 0.0
      %750 = vmatpush1.msra.mxu0 0.0
      %751 = vmatprep.subr.mxu0 0.0
      %752 = vmatpush1.msra.mxu0 0.0
      %753 = vmatprep.subr.mxu0 0.0
      %754 = vmatpush1.msra.mxu0 0.0
      %755 = vmatprep.subr.mxu0 0.0
      %756 = vmatpush1.msra.mxu0 %v592
      %757 = vmatprep.subr.mxu0 0.0
      %758 = vmatpush1.msra.mxu0 %v591
      %759 = vmatprep.subr.mxu0 0.0
      %760 = vmatpush1.msra.mxu0 %v590
      %761 = vmatprep.subr.mxu0 0.0
      %762 = vmatpush1.msra.mxu0 %v589
      %763 = vmatprep.subr.mxu0 0.0
      %764 = vmatpush2.msra.mxu0 0.0
      %765 = vmatprep.subr.mxu0 0.0
      %766 = vmatpush2.msra.mxu0 0.0
      %767 = vmatprep.subr.mxu0 0.0
      %768 = vmatpush2.msra.mxu0 0.0
      %769 = vmatprep.subr.mxu0 0.0
      %770 = vmatpush2.msra.mxu0 0.0
      %771 = vmatprep.subr.mxu0 0.0
      %772 = vmatpush2.msra.mxu0 0.0
      %773 = vmatprep.subr.mxu0 0.0
      %774 = vmatpush2.msra.mxu0 0.0
      %775 = vmatprep.subr.mxu0 0.0
      %776 = vmatpush2.msra.mxu0 0.0
      %777 = vmatprep.subr.mxu0 0.0
      %778 = vmatpush2.msra.mxu0 0.0
      %779 = vmatprep.subr.mxu0 0.0
      %780 = vmatpush2.msra.mxu0 0.0
      %781 = vmatprep.subr.mxu0 0.0
      %782 = vmatpush2.msra.mxu0 0.0
      %783 = vmatprep.subr.mxu0 0.0
      %784 = vmatpush2.msra.mxu0 0.0
      %785 = vmatprep.subr.mxu0 0.0
      %786 = vmatpush2.msra.mxu0 0.0
      %787 = vmatprep.subr.mxu0 0.0
      %788 = vmatpush2.msra.mxu0 0.0
      %789 = vmatprep.subr.mxu0 0.0
      %790 = vmatpush2.msra.mxu0 0.0
      %791 = vmatprep.subr.mxu0 0.0
      %792 = vmatpush2.msra.mxu0 0.0
      %793 = vmatprep.subr.mxu0 0.0
      %794 = vmatpush2.msra.mxu0 0.0
      %795 = vmatprep.mubr.f32.mxu0 0.0
      %796 = vmatmul.mubr.f32.gmra.mxu0 %v603
      %v797 = vpop.f32.mrf.mxu0
      %v798 = vadd.f32 0.0, %v797
      %v799 = vpop.f32.mrf.mxu0
      %800 = vmatprep.mubr.f32.mxu0 0.0
      %801 = vmatmul.mubr.f32.gmra.mxu0 %v606
      %v802 = vpop.f32.mrf.mxu0
      %v803 = vadd.f32 0.0, %v802
      %v804 = vpop.f32.mrf.mxu0
      %805 = vmatprep.mubr.f32.mxu0 0.0
      %806 = vmatmul.mubr.f32.gmra.mxu0 %v609
      %v807 = vpop.f32.mrf.mxu0
      %v808 = vadd.f32 0.0, %v807
      %v809 = vpop.f32.mrf.mxu0
      %810 = vmatprep.mubr.f32.mxu0 0.0
      %811 = vmatmul.mubr.f32.gmra.mxu0 %v612
      %v812 = vpop.f32.mrf.mxu0
      %v813 = vadd.f32 0.0, %v812
      %v814 = vpop.f32.mrf.mxu0
      %815 = vmatprep.mubr.f32.mxu0 0.0
      %816 = vmatmul.mubr.f32.gmra.mxu0 %v615
      %v817 = vpop.f32.mrf.mxu0
      %v818 = vadd.f32 0.0, %v817
      %v819 = vpop.f32.mrf.mxu0
      %820 = vmatprep.mubr.f32.mxu0 0.0
      %821 = vmatmul.mubr.f32.gmra.mxu0 %v618
      %v822 = vpop.f32.mrf.mxu0
      %v823 = vadd.f32 0.0, %v822
      %v824 = vpop.f32.mrf.mxu0
      %825 = vmatprep.mubr.f32.mxu0 0.0
      %826 = vmatmul.mubr.f32.gmra.mxu0 %v621
      %v827 = vpop.f32.mrf.mxu0
      %v828 = vadd.f32 0.0, %v827
      %v829 = vpop.f32.mrf.mxu0
      %830 = vmatprep.mubr.f32.mxu0 0.0
      %831 = vmatmul.mubr.f32.gmra.mxu0 %v624
      %v832 = vpop.f32.mrf.mxu0
      %v833 = vadd.f32 0.0, %v832
      %v834 = vpop.f32.mrf.mxu0
      %835 = vdwg.mxu0
      %v836 = vld [vmem:[%s3] sm:$0xff]
      %v837 = vld [vmem:[%s3 + $0x8] sm:$0xff]
      %v838 = vld [vmem:[%s3 + $0x10] sm:$0xff]
      %v839 = vld [vmem:[%s3 + $0x18] sm:$0xff]
      %v840 = vld [vmem:[%s3 + $0x20] sm:$0xff]
      %v841 = vld [vmem:[%s3 + $0x28] sm:$0xff]
      %v842 = vld [vmem:[%s3 + $0x30] sm:$0xff]
      %v843 = vld [vmem:[%s3 + $0x38] sm:$0xff]
      %v844 = vmul.f32 %v798, %v836
      %v845 = vmul.f32 %v803, %v837
      %v846 = vmul.f32 %v808, %v838
      %v847 = vmul.f32 %v813, %v839
      %v848 = vmul.f32 %v818, %v840
      %v849 = vmul.f32 %v823, %v841
      %v850 = vmul.f32 %v828, %v842
      %v851 = vmul.f32 %v833, %v843
      %v852 = vld [vmem:[%s4] sm:$0xff]
      %v853 = vld [vmem:[%s4 + $0x8] sm:$0xff]
      %v854 = vld [vmem:[%s4 + $0x10] sm:$0xff]
      %v855 = vld [vmem:[%s4 + $0x18] sm:$0xff]
      %v856 = vld [vmem:[%s4 + $0x20] sm:$0xff]
      %v857 = vld [vmem:[%s4 + $0x28] sm:$0xff]
      %v858 = vld [vmem:[%s4 + $0x30] sm:$0xff]
      %v859 = vld [vmem:[%s4 + $0x38] sm:$0xff]
      %v860 = vmul.f32 %v693, %v844
      %v861 = vmul.f32 %v698, %v845
      %v862 = vmul.f32 %v703, %v846
      %v863 = vmul.f32 %v708, %v847
      %v864 = vmul.f32 %v713, %v848
      %v865 = vmul.f32 %v718, %v849
      %v866 = vmul.f32 %v723, %v850
      %v867 = vmul.f32 %v728, %v851
      %v868 = vsub.f32 %v852, %v860
      %v869 = vsub.f32 %v853, %v861
      %v870 = vsub.f32 %v854, %v862
      %v871 = vsub.f32 %v855, %v863
      %v872 = vsub.f32 %v856, %v864
      %v873 = vsub.f32 %v857, %v865
      %v874 = vsub.f32 %v858, %v866
      %v875 = vsub.f32 %v859, %v867
      %877 = vset.pattern.permute.xlu0 0
      %878 = vperm.xlu0 %877, %v844
      %v879 = vpop.permute.xlu0 %878
      %882 = vset.pattern.permute.xlu0 0
      %883 = vperm.xlu0 %882, %v845
      %v884 = vpop.permute.xlu0 %883
      %887 = vset.pattern.permute.xlu0 0
      %888 = vperm.xlu0 %887, %v846
      %v889 = vpop.permute.xlu0 %888
      %892 = vset.pattern.permute.xlu0 0
      %893 = vperm.xlu0 %892, %v847
      %v894 = vpop.permute.xlu0 %893
      %897 = vset.pattern.permute.xlu0 0
      %898 = vperm.xlu0 %897, %v848
      %v899 = vpop.permute.xlu0 %898
      %902 = vset.pattern.permute.xlu0 0
      %903 = vperm.xlu0 %902, %v849
      %v904 = vpop.permute.xlu0 %903
      %907 = vset.pattern.permute.xlu0 0
      %908 = vperm.xlu0 %907, %v850
      %v909 = vpop.permute.xlu0 %908
      %912 = vset.pattern.permute.xlu0 0
      %913 = vperm.xlu0 %912, %v851
      %v914 = vpop.permute.xlu0 %913
      %v916 = vmul.f32 %v334, %v879
      %v917 = vmul.f32 %v335, %v884
      %v918 = vmul.f32 %v336, %v889
      %v919 = vmul.f32 %v337, %v894
      %v920 = vmul.f32 %v338, %v899
      %v921 = vmul.f32 %v339, %v904
      %v922 = vmul.f32 %v340, %v909
      %v923 = vmul.f32 %v341, %v914
      %925 = vset.pattern.permute.xlu0 0
      %926 = vperm.xlu0 %925, %v868
      %v927 = vpop.permute.xlu0 %926
      %930 = vset.pattern.permute.xlu0 0
      %931 = vperm.xlu0 %930, %v869
      %v932 = vpop.permute.xlu0 %931
      %935 = vset.pattern.permute.xlu0 0
      %936 = vperm.xlu0 %935, %v870
      %v937 = vpop.permute.xlu0 %936
      %940 = vset.pattern.permute.xlu0 0
      %941 = vperm.xlu0 %940, %v871
      %v942 = vpop.permute.xlu0 %941
      %945 = vset.pattern.permute.xlu0 0
      %946 = vperm.xlu0 %945, %v872
      %v947 = vpop.permute.xlu0 %946
      %950 = vset.pattern.permute.xlu0 0
      %951 = vperm.xlu0 %950, %v873
      %v952 = vpop.permute.xlu0 %951
      %955 = vset.pattern.permute.xlu0 0
      %956 = vperm.xlu0 %955, %v874
      %v957 = vpop.permute.xlu0 %956
      %960 = vset.pattern.permute.xlu0 0
      %961 = vperm.xlu0 %960, %v875
      %v962 = vpop.permute.xlu0 %961
      %v964 = vadd.f32 %v916, %v927
      %v965 = vadd.f32 %v917, %v932
      %v966 = vadd.f32 %v918, %v937
      %v967 = vadd.f32 %v919, %v942
      %v968 = vadd.f32 %v920, %v947
      %v969 = vadd.f32 %v921, %v952
      %v970 = vadd.f32 %v922, %v957
      %v971 = vadd.f32 %v923, %v962
      %v972 = vpack.c.bf16 %v965, %v964
      %v973 = vpack.c.bf16 %v967, %v966
      %v974 = vpack.c.bf16 %v969, %v968
      %v975 = vpack.c.bf16 %v971, %v970
      %v976 = vld [vmem:[%s5] sm:$0xf]
      %v977 = vld [vmem:[%s5 + $0x4] sm:$0xf]
      %v978 = vld [vmem:[%s5 + $0x8] sm:$0xf]
      %v979 = vld [vmem:[%s5 + $0xc] sm:$0xf]
      %v980 = vld [vmem:[%s5 + $0x10] sm:$0xf]
      %v981 = vld [vmem:[%s5 + $0x14] sm:$0xf]
      %v982 = vld [vmem:[%s5 + $0x18] sm:$0xf]
      %v983 = vld [vmem:[%s5 + $0x1c] sm:$0xf]
      %v984 = vld [vmem:[%s5 + $0x20] sm:$0xf]
      %v985 = vld [vmem:[%s5 + $0x24] sm:$0xf]
      %v986 = vld [vmem:[%s5 + $0x28] sm:$0xf]
      %v987 = vld [vmem:[%s5 + $0x2c] sm:$0xf]
      %v988 = vld [vmem:[%s5 + $0x30] sm:$0xf]
      %v989 = vld [vmem:[%s5 + $0x34] sm:$0xf]
      %v990 = vld [vmem:[%s5 + $0x38] sm:$0xf]
      %v991 = vld [vmem:[%s5 + $0x3c] sm:$0xf]
      %v992 = vld [vmem:[%s5 + $0x40] sm:$0xf]
      %v993 = vld [vmem:[%s5 + $0x44] sm:$0xf]
      %v994 = vld [vmem:[%s5 + $0x48] sm:$0xf]
      %v995 = vld [vmem:[%s5 + $0x4c] sm:$0xf]
      %v996 = vld [vmem:[%s5 + $0x50] sm:$0xf]
      %v997 = vld [vmem:[%s5 + $0x54] sm:$0xf]
      %v998 = vld [vmem:[%s5 + $0x58] sm:$0xf]
      %v999 = vld [vmem:[%s5 + $0x5c] sm:$0xf]
      %v1000 = vld [vmem:[%s6] sm:$0xff]
      %v1001 = vld [vmem:[%s6 + $0x8] sm:$0xff]
      %v1002 = vld [vmem:[%s6 + $0x10] sm:$0xff]
      %v1003 = vld [vmem:[%s6 + $0x18] sm:$0xff]
      %v1004 = vld [vmem:[%s6 + $0x20] sm:$0xff]
      %v1005 = vld [vmem:[%s6 + $0x28] sm:$0xff]
      %v1006 = vld [vmem:[%s6 + $0x30] sm:$0xff]
      %v1007 = vld [vmem:[%s6 + $0x38] sm:$0xff]
      %v1008 = vld [vmem:[%s6 + $0x40] sm:$0xff]
      %v1009 = vld [vmem:[%s6 + $0x48] sm:$0xff]
      %v1010 = vld [vmem:[%s6 + $0x50] sm:$0xff]
      %v1011 = vld [vmem:[%s6 + $0x58] sm:$0xff]
      %v1012 = vld [vmem:[%s6 + $0x60] sm:$0xff]
      %v1013 = vld [vmem:[%s6 + $0x68] sm:$0xff]
      %v1014 = vld [vmem:[%s6 + $0x70] sm:$0xff]
      %v1015 = vld [vmem:[%s6 + $0x78] sm:$0xff]
      %v1016 = vld [vmem:[%s6 + $0x80] sm:$0xff]
      %v1017 = vld [vmem:[%s6 + $0x88] sm:$0xff]
      %v1018 = vld [vmem:[%s6 + $0x90] sm:$0xff]
      %v1019 = vld [vmem:[%s6 + $0x98] sm:$0xff]
      %v1020 = vld [vmem:[%s6 + $0xa0] sm:$0xff]
      %v1021 = vld [vmem:[%s6 + $0xa8] sm:$0xff]
      %v1022 = vld [vmem:[%s6 + $0xb0] sm:$0xff]
      %v1023 = vld [vmem:[%s6 + $0xb8] sm:$0xff]
      %1025 = vset.pattern.permute.xlu0 0
      %1026 = vperm.xlu0 %1025, %v1000
      %v1027 = vpop.permute.xlu0 %1026
      %1030 = vset.pattern.permute.xlu0 0
      %1031 = vperm.xlu0 %1030, %v1001
      %v1032 = vpop.permute.xlu0 %1031
      %1035 = vset.pattern.permute.xlu0 0
      %1036 = vperm.xlu0 %1035, %v1002
      %v1037 = vpop.permute.xlu0 %1036
      %1040 = vset.pattern.permute.xlu0 0
      %1041 = vperm.xlu0 %1040, %v1003
      %v1042 = vpop.permute.xlu0 %1041
      %1045 = vset.pattern.permute.xlu0 0
      %1046 = vperm.xlu0 %1045, %v1004
      %v1047 = vpop.permute.xlu0 %1046
      %1050 = vset.pattern.permute.xlu0 0
      %1051 = vperm.xlu0 %1050, %v1005
      %v1052 = vpop.permute.xlu0 %1051
      %1055 = vset.pattern.permute.xlu0 0
      %1056 = vperm.xlu0 %1055, %v1006
      %v1057 = vpop.permute.xlu0 %1056
      %1060 = vset.pattern.permute.xlu0 0
      %1061 = vperm.xlu0 %1060, %v1007
      %v1062 = vpop.permute.xlu0 %1061
      %1065 = vset.pattern.permute.xlu0 0
      %1066 = vperm.xlu0 %1065, %v1008
      %v1067 = vpop.permute.xlu0 %1066
      %1070 = vset.pattern.permute.xlu0 0
      %1071 = vperm.xlu0 %1070, %v1009
      %v1072 = vpop.permute.xlu0 %1071
      %1075 = vset.pattern.permute.xlu0 0
      %1076 = vperm.xlu0 %1075, %v1010
      %v1077 = vpop.permute.xlu0 %1076
      %1080 = vset.pattern.permute.xlu0 0
      %1081 = vperm.xlu0 %1080, %v1011
      %v1082 = vpop.permute.xlu0 %1081
      %1085 = vset.pattern.permute.xlu0 0
      %1086 = vperm.xlu0 %1085, %v1012
      %v1087 = vpop.permute.xlu0 %1086
      %1090 = vset.pattern.permute.xlu0 0
      %1091 = vperm.xlu0 %1090, %v1013
      %v1092 = vpop.permute.xlu0 %1091
      %1095 = vset.pattern.permute.xlu0 0
      %1096 = vperm.xlu0 %1095, %v1014
      %v1097 = vpop.permute.xlu0 %1096
      %1100 = vset.pattern.permute.xlu0 0
      %1101 = vperm.xlu0 %1100, %v1015
      %v1102 = vpop.permute.xlu0 %1101
      %1105 = vset.pattern.permute.xlu0 0
      %1106 = vperm.xlu0 %1105, %v1016
      %v1107 = vpop.permute.xlu0 %1106
      %1110 = vset.pattern.permute.xlu0 0
      %1111 = vperm.xlu0 %1110, %v1017
      %v1112 = vpop.permute.xlu0 %1111
      %1115 = vset.pattern.permute.xlu0 0
      %1116 = vperm.xlu0 %1115, %v1018
      %v1117 = vpop.permute.xlu0 %1116
      %1120 = vset.pattern.permute.xlu0 0
      %1121 = vperm.xlu0 %1120, %v1019
      %v1122 = vpop.permute.xlu0 %1121
      %1125 = vset.pattern.permute.xlu0 0
      %1126 = vperm.xlu0 %1125, %v1020
      %v1127 = vpop.permute.xlu0 %1126
      %1130 = vset.pattern.permute.xlu0 0
      %1131 = vperm.xlu0 %1130, %v1021
      %v1132 = vpop.permute.xlu0 %1131
      %1135 = vset.pattern.permute.xlu0 0
      %1136 = vperm.xlu0 %1135, %v1022
      %v1137 = vpop.permute.xlu0 %1136
      %1140 = vset.pattern.permute.xlu0 0
      %1141 = vperm.xlu0 %1140, %v1023
      %v1142 = vpop.permute.xlu0 %1141
      %v1168 = vunpack.c.l.b16 %v976
      %v1169 = vunpack.c.l.b16 %v977
      %v1170 = vunpack.c.l.b16 %v978
      %v1171 = vunpack.c.l.b16 %v979
      %v1172 = vunpack.c.l.b16 %v980
      %v1173 = vunpack.c.l.b16 %v981
      %v1174 = vunpack.c.l.b16 %v982
      %v1175 = vunpack.c.l.b16 %v983
      %v1176 = vunpack.c.l.b16 %v984
      %v1177 = vunpack.c.l.b16 %v985
      %v1178 = vunpack.c.l.b16 %v986
      %v1179 = vunpack.c.l.b16 %v987
      %v1180 = vunpack.c.l.b16 %v988
      %v1181 = vunpack.c.l.b16 %v989
      %v1182 = vunpack.c.l.b16 %v990
      %v1183 = vunpack.c.l.b16 %v991
      %v1184 = vunpack.c.l.b16 %v992
      %v1185 = vunpack.c.l.b16 %v993
      %v1186 = vunpack.c.l.b16 %v994
      %v1187 = vunpack.c.l.b16 %v995
      %v1188 = vunpack.c.l.b16 %v996
      %v1189 = vunpack.c.l.b16 %v997
      %v1190 = vunpack.c.l.b16 %v998
      %v1191 = vunpack.c.l.b16 %v999
      %v1192 = vpack.c.b16 %v1169, %v1168
      %v1193 = vpack.c.b16 %v1171, %v1170
      %v1194 = vpack.c.b16 %v1173, %v1172
      %v1195 = vpack.c.b16 %v1175, %v1174
      %v1196 = vpack.c.b16 %v1177, %v1176
      %v1197 = vpack.c.b16 %v1179, %v1178
      %v1198 = vpack.c.b16 %v1181, %v1180
      %v1199 = vpack.c.b16 %v1183, %v1182
      %v1200 = vpack.c.b16 %v1185, %v1184
      %v1201 = vpack.c.b16 %v1187, %v1186
      %v1202 = vpack.c.b16 %v1189, %v1188
      %v1203 = vpack.c.b16 %v1191, %v1190
      %v1205 = vsel %vm386, %v1192, 0
      %v1208 = vsel %vm386, %v1193, 0
      %v1211 = vsel %vm386, %v1194, 0
      %v1214 = vsel %vm386, %v1195, 0
      %v1217 = vsel %vm386, %v1196, 0
      %v1220 = vsel %vm386, %v1197, 0
      %v1223 = vsel %vm386, %v1198, 0
      %v1226 = vsel %vm386, %v1199, 0
      %v1229 = vsel %vm386, %v1200, 0
      %v1232 = vsel %vm386, %v1201, 0
      %v1235 = vsel %vm386, %v1202, 0
      %v1238 = vsel %vm386, %v1203, 0
      %1240 = vmatprep.subr.bf16.mxu0 0
      %1241 = vmatpush1.bf16.msra.mxu0 0
      %1242 = vmatprep.subr.bf16.mxu0 0
      %1243 = vmatpush1.bf16.msra.mxu0 0
      %1244 = vmatprep.subr.bf16.mxu0 0
      %1245 = vmatpush1.bf16.msra.mxu0 0
      %1246 = vmatprep.subr.bf16.mxu0 0
      %1247 = vmatpush1.bf16.msra.mxu0 0
      %1248 = vmatprep.subr.bf16.mxu0 0
      %1249 = vmatpush1.bf16.msra.mxu0 %v975
      %1250 = vmatprep.subr.bf16.mxu0 0
      %1251 = vmatpush1.bf16.msra.mxu0 %v974
      %1252 = vmatprep.subr.bf16.mxu0 0
      %1253 = vmatpush1.bf16.msra.mxu0 %v973
      %1254 = vmatprep.subr.bf16.mxu0 0
      %1255 = vmatpush1.bf16.msra.mxu0 %v972
      %1256 = vmatprep.subr.bf16.mxu0 0
      %1257 = vmatpush2.bf16.msra.mxu0 0
      %1258 = vmatprep.subr.bf16.mxu0 0
      %1259 = vmatpush2.bf16.msra.mxu0 0
      %1260 = vmatprep.subr.bf16.mxu0 0
      %1261 = vmatpush2.bf16.msra.mxu0 0
      %1262 = vmatprep.subr.bf16.mxu0 0
      %1263 = vmatpush2.bf16.msra.mxu0 0
      %1264 = vmatprep.subr.bf16.mxu0 0
      %1265 = vmatpush2.bf16.msra.mxu0 0
      %1266 = vmatprep.subr.bf16.mxu0 0
      %1267 = vmatpush2.bf16.msra.mxu0 0
      %1268 = vmatprep.subr.bf16.mxu0 0
      %1269 = vmatpush2.bf16.msra.mxu0 0
      %1270 = vmatprep.subr.bf16.mxu0 0
      %1271 = vmatpush2.bf16.msra.mxu0 0
      %1272 = vmatprep.mubr.bf16.mxu0 0
      %1273 = vmatmul.mubr.bf16.gmra.mxu0 %v1205
      %v1274 = vpop.f32.mrf.mxu0
      %v1275 = vadd.f32 %v1027, %v1274
      %v1276 = vpop.f32.mrf.mxu0
      %v1277 = vpop.f32.mrf.mxu0
      %v1278 = vadd.f32 %v1032, %v1277
      %v1279 = vpop.f32.mrf.mxu0
      %1280 = vmatprep.mubr.bf16.mxu0 0
      %1281 = vmatmul.mubr.bf16.gmra.mxu0 %v1208
      %v1282 = vpop.f32.mrf.mxu0
      %v1283 = vadd.f32 %v1037, %v1282
      %v1284 = vpop.f32.mrf.mxu0
      %v1285 = vpop.f32.mrf.mxu0
      %v1286 = vadd.f32 %v1042, %v1285
      %v1287 = vpop.f32.mrf.mxu0
      %1288 = vmatprep.mubr.bf16.mxu0 0
      %1289 = vmatmul.mubr.bf16.gmra.mxu0 %v1211
      %v1290 = vpop.f32.mrf.mxu0
      %v1291 = vadd.f32 %v1047, %v1290
      %v1292 = vpop.f32.mrf.mxu0
      %v1293 = vpop.f32.mrf.mxu0
      %v1294 = vadd.f32 %v1052, %v1293
      %v1295 = vpop.f32.mrf.mxu0
      %1296 = vmatprep.mubr.bf16.mxu0 0
      %1297 = vmatmul.mubr.bf16.gmra.mxu0 %v1214
      %v1298 = vpop.f32.mrf.mxu0
      %v1299 = vadd.f32 %v1057, %v1298
      %v1300 = vpop.f32.mrf.mxu0
      %v1301 = vpop.f32.mrf.mxu0
      %v1302 = vadd.f32 %v1062, %v1301
      %v1303 = vpop.f32.mrf.mxu0
      %1304 = vmatprep.mubr.bf16.mxu0 0
      %1305 = vmatmul.mubr.bf16.gmra.mxu0 %v1217
      %v1306 = vpop.f32.mrf.mxu0
      %v1307 = vadd.f32 %v1067, %v1306
      %v1308 = vpop.f32.mrf.mxu0
      %v1309 = vpop.f32.mrf.mxu0
      %v1310 = vadd.f32 %v1072, %v1309
      %v1311 = vpop.f32.mrf.mxu0
      %1312 = vmatprep.mubr.bf16.mxu0 0
      %1313 = vmatmul.mubr.bf16.gmra.mxu0 %v1220
      %v1314 = vpop.f32.mrf.mxu0
      %v1315 = vadd.f32 %v1077, %v1314
      %v1316 = vpop.f32.mrf.mxu0
      %v1317 = vpop.f32.mrf.mxu0
      %v1318 = vadd.f32 %v1082, %v1317
      %v1319 = vpop.f32.mrf.mxu0
      %1320 = vmatprep.mubr.bf16.mxu0 0
      %1321 = vmatmul.mubr.bf16.gmra.mxu0 %v1223
      %v1322 = vpop.f32.mrf.mxu0
      %v1323 = vadd.f32 %v1087, %v1322
      %v1324 = vpop.f32.mrf.mxu0
      %v1325 = vpop.f32.mrf.mxu0
      %v1326 = vadd.f32 %v1092, %v1325
      %v1327 = vpop.f32.mrf.mxu0
      %1328 = vmatprep.mubr.bf16.mxu0 0
      %1329 = vmatmul.mubr.bf16.gmra.mxu0 %v1226
      %v1330 = vpop.f32.mrf.mxu0
      %v1331 = vadd.f32 %v1097, %v1330
      %v1332 = vpop.f32.mrf.mxu0
      %v1333 = vpop.f32.mrf.mxu0
      %v1334 = vadd.f32 %v1102, %v1333
      %v1335 = vpop.f32.mrf.mxu0
      %1336 = vmatprep.mubr.bf16.mxu0 0
      %1337 = vmatmul.mubr.bf16.gmra.mxu0 %v1229
      %v1338 = vpop.f32.mrf.mxu0
      %v1339 = vadd.f32 %v1107, %v1338
      %v1340 = vpop.f32.mrf.mxu0
      %v1341 = vpop.f32.mrf.mxu0
      %v1342 = vadd.f32 %v1112, %v1341
      %v1343 = vpop.f32.mrf.mxu0
      %1344 = vmatprep.mubr.bf16.mxu0 0
      %1345 = vmatmul.mubr.bf16.gmra.mxu0 %v1232
      %v1346 = vpop.f32.mrf.mxu0
      %v1347 = vadd.f32 %v1117, %v1346
      %v1348 = vpop.f32.mrf.mxu0
      %v1349 = vpop.f32.mrf.mxu0
      %v1350 = vadd.f32 %v1122, %v1349
      %v1351 = vpop.f32.mrf.mxu0
      %1352 = vmatprep.mubr.bf16.mxu0 0
      %1353 = vmatmul.mubr.bf16.gmra.mxu0 %v1235
      %v1354 = vpop.f32.mrf.mxu0
      %v1355 = vadd.f32 %v1127, %v1354
      %v1356 = vpop.f32.mrf.mxu0
      %v1357 = vpop.f32.mrf.mxu0
      %v1358 = vadd.f32 %v1132, %v1357
      %v1359 = vpop.f32.mrf.mxu0
      %1360 = vmatprep.mubr.bf16.mxu0 0
      %1361 = vmatmul.mubr.bf16.gmra.mxu0 %v1238
      %v1362 = vpop.f32.mrf.mxu0
      %v1363 = vadd.f32 %v1137, %v1362
      %v1364 = vpop.f32.mrf.mxu0
      %v1365 = vpop.f32.mrf.mxu0
      %v1366 = vadd.f32 %v1142, %v1365
      %v1367 = vpop.f32.mrf.mxu0
      %1368 = vdwg.mxu0
      %v1369 = vpack.c.bf16 %v1278, %v1275
      %v1370 = vpack.c.bf16 %v1286, %v1283
      %v1371 = vpack.c.bf16 %v1294, %v1291
      %v1372 = vpack.c.bf16 %v1302, %v1299
      %v1373 = vpack.c.bf16 %v1310, %v1307
      %v1374 = vpack.c.bf16 %v1318, %v1315
      %v1375 = vpack.c.bf16 %v1326, %v1323
      %v1376 = vpack.c.bf16 %v1334, %v1331
      %v1377 = vpack.c.bf16 %v1342, %v1339
      %v1378 = vpack.c.bf16 %v1350, %v1347
      %v1379 = vpack.c.bf16 %v1358, %v1355
      %v1380 = vpack.c.bf16 %v1366, %v1363
      %1381 = vxpose.xlu0.c.b16.start [1/8] %v1369, 128
      %1382 = vxpose.xlu0.c.b16.cont [2/8] %v1370, 128
      %1383 = vxpose.xlu0.c.b16.cont [3/8] %v1371, 128
      %1384 = vxpose.xlu0.c.b16.cont [4/8] %v1372, 128
      %1385 = vxpose.xlu0.c.b16.cont [5/8] 0, 128
      %1386 = vxpose.xlu0.c.b16.cont [6/8] 0, 128
      %1387 = vxpose.xlu0.c.b16.cont [7/8] 0, 128
      %1388 = vxpose.xlu0.c.b16.end [8/8] 0, 128
      %v1389 = vpop.trf.xlu0
      %v1390 = vpop.trf.xlu0
      %v1391 = vpop.trf.xlu0
      %v1392 = vpop.trf.xlu0
      %v1393 = vpop.trf.xlu0
      %v1394 = vpop.trf.xlu0
      %v1395 = vpop.trf.xlu0
      %v1396 = vpop.trf.xlu0
      %v1398 = vsel %vm386, %v1389, 0
      %v1401 = vsel %vm386, %v1390, 0
      %v1404 = vsel %vm386, %v1391, 0
      %v1407 = vsel %vm386, %v1392, 0
      %v1410 = vsel %vm386, %v1393, 0
      %v1413 = vsel %vm386, %v1394, 0
      %v1416 = vsel %vm386, %v1395, 0
      %v1419 = vsel %vm386, %v1396, 0
      %1421 = vmatprep.subr.bf16.mxu0 0
      %1422 = vmatpush1.bf16.msra.mxu0 0
      %1423 = vmatprep.subr.bf16.mxu0 0
      %1424 = vmatpush1.bf16.msra.mxu0 0
      %1425 = vmatprep.subr.bf16.mxu0 0
      %1426 = vmatpush1.bf16.msra.mxu0 0
      %1427 = vmatprep.subr.bf16.mxu0 0
      %1428 = vmatpush1.bf16.msra.mxu0 0
      %1429 = vmatprep.subr.bf16.mxu0 0
      %1430 = vmatpush1.bf16.msra.mxu0 %v1376
      %1431 = vmatprep.subr.bf16.mxu0 0
      %1432 = vmatpush1.bf16.msra.mxu0 %v1375
      %1433 = vmatprep.subr.bf16.mxu0 0
      %1434 = vmatpush1.bf16.msra.mxu0 %v1374
      %1435 = vmatprep.subr.bf16.mxu0 0
      %1436 = vmatpush1.bf16.msra.mxu0 %v1373
      %1437 = vmatprep.subr.bf16.mxu0 0
      %1438 = vmatpush2.bf16.msra.mxu0 0
      %1439 = vmatprep.subr.bf16.mxu0 0
      %1440 = vmatpush2.bf16.msra.mxu0 0
      %1441 = vmatprep.subr.bf16.mxu0 0
      %1442 = vmatpush2.bf16.msra.mxu0 0
      %1443 = vmatprep.subr.bf16.mxu0 0
      %1444 = vmatpush2.bf16.msra.mxu0 0
      %1445 = vmatprep.subr.bf16.mxu0 0
      %1446 = vmatpush2.bf16.msra.mxu0 0
      %1447 = vmatprep.subr.bf16.mxu0 0
      %1448 = vmatpush2.bf16.msra.mxu0 0
      %1449 = vmatprep.subr.bf16.mxu0 0
      %1450 = vmatpush2.bf16.msra.mxu0 0
      %1451 = vmatprep.subr.bf16.mxu0 0
      %1452 = vmatpush2.bf16.msra.mxu0 0
      %1453 = vmatprep.mubr.bf16.mxu0 0
      %1454 = vmatmul.mubr.bf16.gmra.mxu0 %v1398
      %v1455 = vpop.f32.mrf.mxu0
      %v1456 = vadd.f32 0.0, %v1455
      %v1457 = vpop.f32.mrf.mxu0
      %v1458 = vpop.f32.mrf.mxu0
      %v1459 = vadd.f32 0.0, %v1458
      %v1460 = vpop.f32.mrf.mxu0
      %1461 = vmatprep.mubr.bf16.mxu0 0
      %1462 = vmatmul.mubr.bf16.gmra.mxu0 %v1401
      %v1463 = vpop.f32.mrf.mxu0
      %v1464 = vadd.f32 0.0, %v1463
      %v1465 = vpop.f32.mrf.mxu0
      %v1466 = vpop.f32.mrf.mxu0
      %v1467 = vadd.f32 0.0, %v1466
      %v1468 = vpop.f32.mrf.mxu0
      %1469 = vmatprep.mubr.bf16.mxu0 0
      %1470 = vmatmul.mubr.bf16.gmra.mxu0 %v1404
      %v1471 = vpop.f32.mrf.mxu0
      %v1472 = vadd.f32 0.0, %v1471
      %v1473 = vpop.f32.mrf.mxu0
      %v1474 = vpop.f32.mrf.mxu0
      %v1475 = vadd.f32 0.0, %v1474
      %v1476 = vpop.f32.mrf.mxu0
      %1477 = vmatprep.mubr.bf16.mxu0 0
      %1478 = vmatmul.mubr.bf16.gmra.mxu0 %v1407
      %v1479 = vpop.f32.mrf.mxu0
      %v1480 = vadd.f32 0.0, %v1479
      %v1481 = vpop.f32.mrf.mxu0
      %v1482 = vpop.f32.mrf.mxu0
      %v1483 = vadd.f32 0.0, %v1482
      %v1484 = vpop.f32.mrf.mxu0
      %1485 = vmatprep.mubr.bf16.mxu0 0
      %1486 = vmatmul.mubr.bf16.gmra.mxu0 %v1410
      %v1487 = vpop.f32.mrf.mxu0
      %v1488 = vadd.f32 0.0, %v1487
      %v1489 = vpop.f32.mrf.mxu0
      %v1490 = vpop.f32.mrf.mxu0
      %v1491 = vadd.f32 0.0, %v1490
      %v1492 = vpop.f32.mrf.mxu0
      %1493 = vmatprep.mubr.bf16.mxu0 0
      %1494 = vmatmul.mubr.bf16.gmra.mxu0 %v1413
      %v1495 = vpop.f32.mrf.mxu0
      %v1496 = vadd.f32 0.0, %v1495
      %v1497 = vpop.f32.mrf.mxu0
      %v1498 = vpop.f32.mrf.mxu0
      %v1499 = vadd.f32 0.0, %v1498
      %v1500 = vpop.f32.mrf.mxu0
      %1501 = vmatprep.mubr.bf16.mxu0 0
      %1502 = vmatmul.mubr.bf16.gmra.mxu0 %v1416
      %v1503 = vpop.f32.mrf.mxu0
      %v1504 = vadd.f32 0.0, %v1503
      %v1505 = vpop.f32.mrf.mxu0
      %v1506 = vpop.f32.mrf.mxu0
      %v1507 = vadd.f32 0.0, %v1506
      %v1508 = vpop.f32.mrf.mxu0
      %1509 = vmatprep.mubr.bf16.mxu0 0
      %1510 = vmatmul.mubr.bf16.gmra.mxu0 %v1419
      %v1511 = vpop.f32.mrf.mxu0
      %v1512 = vadd.f32 0.0, %v1511
      %v1513 = vpop.f32.mrf.mxu0
      %v1514 = vpop.f32.mrf.mxu0
      %v1515 = vadd.f32 0.0, %v1514
      %v1516 = vpop.f32.mrf.mxu0
      %1517 = vdwg.mxu0
      %v1518 = vlaneseq
      %v1519 = vand.u32 %v1518, 127
      %vm1520 = vcmp.lt.s32.totalorder %v1519, 64
      %v1521 = vsel %vm1520, %v1456, -1e+30
      %v1522 = vsel %vm1520, %v1459, -1e+30
      %v1523 = vsel %vm1520, %v1464, -1e+30
      %v1524 = vsel %vm1520, %v1467, -1e+30
      %v1525 = vsel %vm1520, %v1472, -1e+30
      %v1526 = vsel %vm1520, %v1475, -1e+30
      %v1527 = vsel %vm1520, %v1480, -1e+30
      %v1528 = vsel %vm1520, %v1483, -1e+30
      %v1529 = vsel %vm1520, %v1488, -1e+30
      %v1530 = vsel %vm1520, %v1491, -1e+30
      %v1531 = vsel %vm1520, %v1496, -1e+30
      %v1532 = vsel %vm1520, %v1499, -1e+30
      %v1533 = vsel %vm1520, %v1504, -1e+30
      %v1534 = vsel %vm1520, %v1507, -1e+30
      %v1535 = vsel %vm1520, %v1512, -1e+30
      %v1536 = vsel %vm1520, %v1515, -1e+30
      %1537 = vmax.xlane.f32.xlu0 %v1521
      %v1538 = vpop.xlane.xlu0 %1537
      %1539 = vmax.xlane.f32.xlu0 %v1522
      %v1540 = vpop.xlane.xlu0 %1539
      %1541 = vmax.xlane.f32.xlu0 %v1523
      %v1542 = vpop.xlane.xlu0 %1541
      %1543 = vmax.xlane.f32.xlu0 %v1524
      %v1544 = vpop.xlane.xlu0 %1543
      %1545 = vmax.xlane.f32.xlu0 %v1525
      %v1546 = vpop.xlane.xlu0 %1545
      %1547 = vmax.xlane.f32.xlu0 %v1526
      %v1548 = vpop.xlane.xlu0 %1547
      %1549 = vmax.xlane.f32.xlu0 %v1527
      %v1550 = vpop.xlane.xlu0 %1549
      %1551 = vmax.xlane.f32.xlu0 %v1528
      %v1552 = vpop.xlane.xlu0 %1551
      %1553 = vmax.xlane.f32.xlu0 %v1529
      %v1554 = vpop.xlane.xlu0 %1553
      %1555 = vmax.xlane.f32.xlu0 %v1530
      %v1556 = vpop.xlane.xlu0 %1555
      %1557 = vmax.xlane.f32.xlu0 %v1531
      %v1558 = vpop.xlane.xlu0 %1557
      %1559 = vmax.xlane.f32.xlu0 %v1532
      %v1560 = vpop.xlane.xlu0 %1559
      %1561 = vmax.xlane.f32.xlu0 %v1533
      %v1562 = vpop.xlane.xlu0 %1561
      %1563 = vmax.xlane.f32.xlu0 %v1534
      %v1564 = vpop.xlane.xlu0 %1563
      %1565 = vmax.xlane.f32.xlu0 %v1535
      %v1566 = vpop.xlane.xlu0 %1565
      %1567 = vmax.xlane.f32.xlu0 %v1536
      %v1568 = vpop.xlane.xlu0 %1567
      %v1569 = vsub.f32 %v1521, %v1538
      %v1570 = vsub.f32 %v1522, %v1540
      %v1571 = vsub.f32 %v1523, %v1542
      %v1572 = vsub.f32 %v1524, %v1544
      %v1573 = vsub.f32 %v1525, %v1546
      %v1574 = vsub.f32 %v1526, %v1548
      %v1575 = vsub.f32 %v1527, %v1550
      %v1576 = vsub.f32 %v1528, %v1552
      %v1577 = vsub.f32 %v1529, %v1554
      %v1578 = vsub.f32 %v1530, %v1556
      %v1579 = vsub.f32 %v1531, %v1558
      %v1580 = vsub.f32 %v1532, %v1560
      %v1581 = vsub.f32 %v1533, %v1562
      %v1582 = vsub.f32 %v1534, %v1564
      %v1583 = vsub.f32 %v1535, %v1566
      %v1584 = vsub.f32 %v1536, %v1568
      %v1585 = vmul.f32 %v1569, 1.442695
      %v1586 = vpow.pop %v1585
      %v1587 = vmul.f32 %v1570, 1.442695
      %v1588 = vpow.pop %v1587
      %v1589 = vmul.f32 %v1571, 1.442695
      %v1590 = vpow.pop %v1589
      %v1591 = vmul.f32 %v1572, 1.442695
      %v1592 = vpow.pop %v1591
      %v1593 = vmul.f32 %v1573, 1.442695
      %v1594 = vpow.pop %v1593
      %v1595 = vmul.f32 %v1574, 1.442695
      %v1596 = vpow.pop %v1595
      %v1597 = vmul.f32 %v1575, 1.442695
      %v1598 = vpow.pop %v1597
      %v1599 = vmul.f32 %v1576, 1.442695
      %v1600 = vpow.pop %v1599
      %v1601 = vmul.f32 %v1577, 1.442695
      %v1602 = vpow.pop %v1601
      %v1603 = vmul.f32 %v1578, 1.442695
      %v1604 = vpow.pop %v1603
      %v1605 = vmul.f32 %v1579, 1.442695
      %v1606 = vpow.pop %v1605
      %v1607 = vmul.f32 %v1580, 1.442695
      %v1608 = vpow.pop %v1607
      %v1609 = vmul.f32 %v1581, 1.442695
      %v1610 = vpow.pop %v1609
      %v1611 = vmul.f32 %v1582, 1.442695
      %v1612 = vpow.pop %v1611
      %v1613 = vmul.f32 %v1583, 1.442695
      %v1614 = vpow.pop %v1613
      %v1615 = vmul.f32 %v1584, 1.442695
      %v1616 = vpow.pop %v1615
      %1617 = vadd.xlane.f32.xlu0 %v1586
      %v1618 = vpop.xlane.xlu0 %1617
      %1619 = vadd.xlane.f32.xlu0 %v1588
      %v1620 = vpop.xlane.xlu0 %1619
      %1621 = vadd.xlane.f32.xlu0 %v1590
      %v1622 = vpop.xlane.xlu0 %1621
      %1623 = vadd.xlane.f32.xlu0 %v1592
      %v1624 = vpop.xlane.xlu0 %1623
      %1625 = vadd.xlane.f32.xlu0 %v1594
      %v1626 = vpop.xlane.xlu0 %1625
      %1627 = vadd.xlane.f32.xlu0 %v1596
      %v1628 = vpop.xlane.xlu0 %1627
      %1629 = vadd.xlane.f32.xlu0 %v1598
      %v1630 = vpop.xlane.xlu0 %1629
      %1631 = vadd.xlane.f32.xlu0 %v1600
      %v1632 = vpop.xlane.xlu0 %1631
      %1633 = vadd.xlane.f32.xlu0 %v1602
      %v1634 = vpop.xlane.xlu0 %1633
      %1635 = vadd.xlane.f32.xlu0 %v1604
      %v1636 = vpop.xlane.xlu0 %1635
      %1637 = vadd.xlane.f32.xlu0 %v1606
      %v1638 = vpop.xlane.xlu0 %1637
      %1639 = vadd.xlane.f32.xlu0 %v1608
      %v1640 = vpop.xlane.xlu0 %1639
      %1641 = vadd.xlane.f32.xlu0 %v1610
      %v1642 = vpop.xlane.xlu0 %1641
      %1643 = vadd.xlane.f32.xlu0 %v1612
      %v1644 = vpop.xlane.xlu0 %1643
      %1645 = vadd.xlane.f32.xlu0 %v1614
      %v1646 = vpop.xlane.xlu0 %1645
      %1647 = vadd.xlane.f32.xlu0 %v1616
      %v1648 = vpop.xlane.xlu0 %1647
      %v1649 = vrcp.pop %v1618
      %v1650 = vrcp.pop %v1620
      %v1651 = vrcp.pop %v1622
      %v1652 = vrcp.pop %v1624
      %v1653 = vrcp.pop %v1626
      %v1654 = vrcp.pop %v1628
      %v1655 = vrcp.pop %v1630
      %v1656 = vrcp.pop %v1632
      %v1657 = vrcp.pop %v1634
      %v1658 = vrcp.pop %v1636
      %v1659 = vrcp.pop %v1638
      %v1660 = vrcp.pop %v1640
      %v1661 = vrcp.pop %v1642
      %v1662 = vrcp.pop %v1644
      %v1663 = vrcp.pop %v1646
      %v1664 = vrcp.pop %v1648
      %v1665 = vmul.f32 %v1586, %v1649
      %v1666 = vmul.f32 %v1588, %v1650
      %v1667 = vmul.f32 %v1590, %v1651
      %v1668 = vmul.f32 %v1592, %v1652
      %v1669 = vmul.f32 %v1594, %v1653
      %v1670 = vmul.f32 %v1596, %v1654
      %v1671 = vmul.f32 %v1598, %v1655
      %v1672 = vmul.f32 %v1600, %v1656
      %v1673 = vmul.f32 %v1602, %v1657
      %v1674 = vmul.f32 %v1604, %v1658
      %v1675 = vmul.f32 %v1606, %v1659
      %v1676 = vmul.f32 %v1608, %v1660
      %v1677 = vmul.f32 %v1610, %v1661
      %v1678 = vmul.f32 %v1612, %v1662
      %v1679 = vmul.f32 %v1614, %v1663
      %v1680 = vmul.f32 %v1616, %v1664
      %v1681 = vpack.c.bf16 %v1666, %v1665
      %v1682 = vpack.c.bf16 %v1668, %v1667
      %v1683 = vpack.c.bf16 %v1670, %v1669
      %v1684 = vpack.c.bf16 %v1672, %v1671
      %v1685 = vpack.c.bf16 %v1674, %v1673
      %v1686 = vpack.c.bf16 %v1676, %v1675
      %v1687 = vpack.c.bf16 %v1678, %v1677
      %v1688 = vpack.c.bf16 %v1680, %v1679
      %1689 = vmatprep.subr.bf16.mxu0 0
      %1690 = vmatpush1.bf16.xpose.msra.mxu0 %v1688
      %1691 = vmatprep.subr.bf16.mxu0 0
      %1692 = vmatpush1.bf16.xpose.msra.mxu0 %v1687
      %1693 = vmatprep.subr.bf16.mxu0 0
      %1694 = vmatpush1.bf16.xpose.msra.mxu0 %v1686
      %1695 = vmatprep.subr.bf16.mxu0 0
      %1696 = vmatpush1.bf16.xpose.msra.mxu0 %v1685
      %1697 = vmatprep.subr.bf16.mxu0 0
      %1698 = vmatpush1.bf16.xpose.msra.mxu0 %v1684
      %1699 = vmatprep.subr.bf16.mxu0 0
      %1700 = vmatpush1.bf16.xpose.msra.mxu0 %v1683
      %1701 = vmatprep.subr.bf16.mxu0 0
      %1702 = vmatpush1.bf16.xpose.msra.mxu0 %v1682
      %1703 = vmatprep.subr.bf16.mxu0 0
      %1704 = vmatpush1.bf16.xpose.msra.mxu0 %v1681
      %1705 = vmatprep.subr.bf16.mxu0 0
      %1706 = vmatpush2.bf16.xpose.msra.mxu0 0
      %1707 = vmatprep.subr.bf16.mxu0 0
      %1708 = vmatpush2.bf16.xpose.msra.mxu0 0
      %1709 = vmatprep.subr.bf16.mxu0 0
      %1710 = vmatpush2.bf16.xpose.msra.mxu0 0
      %1711 = vmatprep.subr.bf16.mxu0 0
      %1712 = vmatpush2.bf16.xpose.msra.mxu0 0
      %1713 = vmatprep.subr.bf16.mxu0 0
      %1714 = vmatpush2.bf16.xpose.msra.mxu0 0
      %1715 = vmatprep.subr.bf16.mxu0 0
      %1716 = vmatpush2.bf16.xpose.msra.mxu0 0
      %1717 = vmatprep.subr.bf16.mxu0 0
      %1718 = vmatpush2.bf16.xpose.msra.mxu0 0
      %1719 = vmatprep.subr.bf16.mxu0 0
      %1720 = vmatpush2.bf16.xpose.msra.mxu0 0
      %1721 = vmatprep.mubr.bf16.mxu0 0
      %1722 = vmatmul.mubr.bf16.gmra.mxu0 %v1377
      %v1723 = vpop.f32.mrf.mxu0
      %v1724 = vadd.f32 0.0, %v1723
      %v1725 = vpop.f32.mrf.mxu0
      %v1726 = vpop.f32.mrf.mxu0
      %v1727 = vadd.f32 0.0, %v1726
      %v1728 = vpop.f32.mrf.mxu0
      %1729 = vmatprep.mubr.bf16.mxu0 0
      %1730 = vmatmul.mubr.bf16.gmra.mxu0 %v1378
      %v1731 = vpop.f32.mrf.mxu0
      %v1732 = vadd.f32 0.0, %v1731
      %v1733 = vpop.f32.mrf.mxu0
      %v1734 = vpop.f32.mrf.mxu0
      %v1735 = vadd.f32 0.0, %v1734
      %v1736 = vpop.f32.mrf.mxu0
      %1737 = vmatprep.mubr.bf16.mxu0 0
      %1738 = vmatmul.mubr.bf16.gmra.mxu0 %v1379
      %v1739 = vpop.f32.mrf.mxu0
      %v1740 = vadd.f32 0.0, %v1739
      %v1741 = vpop.f32.mrf.mxu0
      %v1742 = vpop.f32.mrf.mxu0
      %v1743 = vadd.f32 0.0, %v1742
      %v1744 = vpop.f32.mrf.mxu0
      %1745 = vmatprep.mubr.bf16.mxu0 0
      %1746 = vmatmul.mubr.bf16.gmra.mxu0 %v1380
      %v1747 = vpop.f32.mrf.mxu0
      %v1748 = vadd.f32 0.0, %v1747
      %v1749 = vpop.f32.mrf.mxu0
      %v1750 = vpop.f32.mrf.mxu0
      %v1751 = vadd.f32 0.0, %v1750
      %v1752 = vpop.f32.mrf.mxu0
      %1753 = vdwg.mxu0
      %v1754 = vld [vmem:[%s7] sm:$0xf]
      %v1755 = vld [vmem:[%s7 + $0x4] sm:$0xf]
      %v1756 = vld [vmem:[%s7 + $0x8] sm:$0xf]
      %v1757 = vld [vmem:[%s7 + $0xc] sm:$0xf]
      %v1758 = vld [vmem:[%s7 + $0x10] sm:$0xf]
      %v1759 = vld [vmem:[%s7 + $0x14] sm:$0xf]
      %v1760 = vld [vmem:[%s7 + $0x18] sm:$0xf]
      %v1761 = vld [vmem:[%s7 + $0x1c] sm:$0xf]
      %v1762 = vpack.c.bf16 %v1727, %v1724
      %v1763 = vpack.c.bf16 %v1735, %v1732
      %v1764 = vpack.c.bf16 %v1743, %v1740
      %v1765 = vpack.c.bf16 %v1751, %v1748
      %v1766 = vld [vmem:[%s8] sm:$0xff]
      %v1767 = vld [vmem:[%s8 + $0x8] sm:$0xff]
      %v1768 = vld [vmem:[%s8 + $0x10] sm:$0xff]
      %v1769 = vld [vmem:[%s8 + $0x18] sm:$0xff]
      %v1770 = vld [vmem:[%s8 + $0x20] sm:$0xff]
      %v1771 = vld [vmem:[%s8 + $0x28] sm:$0xff]
      %v1772 = vld [vmem:[%s8 + $0x30] sm:$0xff]
      %v1773 = vld [vmem:[%s8 + $0x38] sm:$0xff]
      %1775 = vset.pattern.permute.xlu0 0
      %1776 = vperm.xlu0 %1775, %v1766
      %v1777 = vpop.permute.xlu0 %1776
      %1780 = vset.pattern.permute.xlu0 0
      %1781 = vperm.xlu0 %1780, %v1767
      %v1782 = vpop.permute.xlu0 %1781
      %1785 = vset.pattern.permute.xlu0 0
      %1786 = vperm.xlu0 %1785, %v1768
      %v1787 = vpop.permute.xlu0 %1786
      %1790 = vset.pattern.permute.xlu0 0
      %1791 = vperm.xlu0 %1790, %v1769
      %v1792 = vpop.permute.xlu0 %1791
      %1795 = vset.pattern.permute.xlu0 0
      %1796 = vperm.xlu0 %1795, %v1770
      %v1797 = vpop.permute.xlu0 %1796
      %1800 = vset.pattern.permute.xlu0 0
      %1801 = vperm.xlu0 %1800, %v1771
      %v1802 = vpop.permute.xlu0 %1801
      %1805 = vset.pattern.permute.xlu0 0
      %1806 = vperm.xlu0 %1805, %v1772
      %v1807 = vpop.permute.xlu0 %1806
      %1810 = vset.pattern.permute.xlu0 0
      %1811 = vperm.xlu0 %1810, %v1773
      %v1812 = vpop.permute.xlu0 %1811
      %v1822 = vunpack.c.l.b16 %v1754
      %v1823 = vunpack.c.l.b16 %v1755
      %v1824 = vunpack.c.l.b16 %v1756
      %v1825 = vunpack.c.l.b16 %v1757
      %v1826 = vunpack.c.l.b16 %v1758
      %v1827 = vunpack.c.l.b16 %v1759
      %v1828 = vunpack.c.l.b16 %v1760
      %v1829 = vunpack.c.l.b16 %v1761
      %v1830 = vpack.c.b16 %v1823, %v1822
      %v1831 = vpack.c.b16 %v1825, %v1824
      %v1832 = vpack.c.b16 %v1827, %v1826
      %v1833 = vpack.c.b16 %v1829, %v1828
      %v1835 = vsel %vm386, %v1830, 0
      %v1838 = vsel %vm386, %v1831, 0
      %v1841 = vsel %vm386, %v1832, 0
      %v1844 = vsel %vm386, %v1833, 0
      %1846 = vmatprep.subr.bf16.mxu0 0
      %1847 = vmatpush1.bf16.msra.mxu0 0
      %1848 = vmatprep.subr.bf16.mxu0 0
      %1849 = vmatpush1.bf16.msra.mxu0 0
      %1850 = vmatprep.subr.bf16.mxu0 0
      %1851 = vmatpush1.bf16.msra.mxu0 0
      %1852 = vmatprep.subr.bf16.mxu0 0
      %1853 = vmatpush1.bf16.msra.mxu0 0
      %1854 = vmatprep.subr.bf16.mxu0 0
      %1855 = vmatpush1.bf16.msra.mxu0 %v1765
      %1856 = vmatprep.subr.bf16.mxu0 0
      %1857 = vmatpush1.bf16.msra.mxu0 %v1764
      %1858 = vmatprep.subr.bf16.mxu0 0
      %1859 = vmatpush1.bf16.msra.mxu0 %v1763
      %1860 = vmatprep.subr.bf16.mxu0 0
      %1861 = vmatpush1.bf16.msra.mxu0 %v1762
      %1862 = vmatprep.subr.bf16.mxu0 0
      %1863 = vmatpush2.bf16.msra.mxu0 0
      %1864 = vmatprep.subr.bf16.mxu0 0
      %1865 = vmatpush2.bf16.msra.mxu0 0
      %1866 = vmatprep.subr.bf16.mxu0 0
      %1867 = vmatpush2.bf16.msra.mxu0 0
      %1868 = vmatprep.subr.bf16.mxu0 0
      %1869 = vmatpush2.bf16.msra.mxu0 0
      %1870 = vmatprep.subr.bf16.mxu0 0
      %1871 = vmatpush2.bf16.msra.mxu0 0
      %1872 = vmatprep.subr.bf16.mxu0 0
      %1873 = vmatpush2.bf16.msra.mxu0 0
      %1874 = vmatprep.subr.bf16.mxu0 0
      %1875 = vmatpush2.bf16.msra.mxu0 0
      %1876 = vmatprep.subr.bf16.mxu0 0
      %1877 = vmatpush2.bf16.msra.mxu0 0
      %1878 = vmatprep.mubr.bf16.mxu0 0
      %1879 = vmatmul.mubr.bf16.gmra.mxu0 %v1835
      %v1880 = vpop.f32.mrf.mxu0
      %v1881 = vadd.f32 %v1777, %v1880
      %v1882 = vpop.f32.mrf.mxu0
      %v1883 = vpop.f32.mrf.mxu0
      %v1884 = vadd.f32 %v1782, %v1883
      %v1885 = vpop.f32.mrf.mxu0
      %1886 = vmatprep.mubr.bf16.mxu0 0
      %1887 = vmatmul.mubr.bf16.gmra.mxu0 %v1838
      %v1888 = vpop.f32.mrf.mxu0
      %v1889 = vadd.f32 %v1787, %v1888
      %v1890 = vpop.f32.mrf.mxu0
      %v1891 = vpop.f32.mrf.mxu0
      %v1892 = vadd.f32 %v1792, %v1891
      %v1893 = vpop.f32.mrf.mxu0
      %1894 = vmatprep.mubr.bf16.mxu0 0
      %1895 = vmatmul.mubr.bf16.gmra.mxu0 %v1841
      %v1896 = vpop.f32.mrf.mxu0
      %v1897 = vadd.f32 %v1797, %v1896
      %v1898 = vpop.f32.mrf.mxu0
      %v1899 = vpop.f32.mrf.mxu0
      %v1900 = vadd.f32 %v1802, %v1899
      %v1901 = vpop.f32.mrf.mxu0
      %1902 = vmatprep.mubr.bf16.mxu0 0
      %1903 = vmatmul.mubr.bf16.gmra.mxu0 %v1844
      %v1904 = vpop.f32.mrf.mxu0
      %v1905 = vadd.f32 %v1807, %v1904
      %v1906 = vpop.f32.mrf.mxu0
      %v1907 = vpop.f32.mrf.mxu0
      %v1908 = vadd.f32 %v1812, %v1907
      %v1909 = vpop.f32.mrf.mxu0
      %1910 = vdwg.mxu0
      %v1911 = vadd.f32 %v1881, %v334
      %v1912 = vadd.f32 %v1884, %v335
      %v1913 = vadd.f32 %v1889, %v336
      %v1914 = vadd.f32 %v1892, %v337
      %v1915 = vadd.f32 %v1897, %v338
      %v1916 = vadd.f32 %v1900, %v339
      %v1917 = vadd.f32 %v1905, %v340
      %v1918 = vadd.f32 %v1908, %v341
      %1919 = vst [vmem:[%s332] sm:$0xff] %v1911
      %1920 = vst [vmem:[%s332 + $0x8] sm:$0xff] %v1912
      %1921 = vst [vmem:[%s332 + $0x10] sm:$0xff] %v1913
      %1922 = vst [vmem:[%s332 + $0x18] sm:$0xff] %v1914
      %1923 = vst [vmem:[%s332 + $0x20] sm:$0xff] %v1915
      %1924 = vst [vmem:[%s332 + $0x28] sm:$0xff] %v1916
      %1925 = vst [vmem:[%s332 + $0x30] sm:$0xff] %v1917
      %1926 = vst [vmem:[%s332 + $0x38] sm:$0xff] %v1918
      %p1927 = scmp.lt.s32.totalorder %s20, 1
      %s1928 = scalar_select %p1927, %s20, 1
      %s1929 = smul.addr %s1928, 8
      %s1930 = smul.addr %s1929, 8
      %s1931 = scalar_lea.vmem %s9, %s1930
      // Predicated region
      $region57: #{self_attention_block.1} parent=55 // pred_check
        %p1932 = pneg %p232
      $region58: #{self_attention_block.1} parent=55 // pred_check_branch
        %1934 = sbr.rel (%p1932) target = $region60
      $region59: #{self_attention_block.1} parent=55 // pred_region
        _
      $region60: #{self_attention_block.1} parent=55 // pred_fallthru
        _
    $region56: #{self_attention_block.1} parent=5 // pred_fallthru
      _
    %p1935 = scmp.le.s32.totalorder 2, %s15
    // Predicated region
    $region61: #{self_attention_block.1} parent=5 // pred_check
      %p1936 = pneg %p1935
    $region62: #{self_attention_block.1} parent=5 // pred_check_branch
      %1938 = sbr.rel (%p1936) target = $region64
    $region63: #{self_attention_block.1} parent=5 // pred_region
      %s1939 = ssub.s32 %s15, 2
      // Predicated region
      $region65: #{self_attention_block.1} parent=63 // pred_check
        %p1940 = pneg %p238
      $region66: #{self_attention_block.1} parent=63 // pred_check_branch
        %1942 = sbr.rel (%p1940) target = $region68
      $region67: #{self_attention_block.1} parent=63 // pred_region
        %p1943 = scmp.lt.s32.totalorder %s21, 1
        %s1944 = scalar_select %p1943, %s21, 1
        %s1945 = smul.addr %s1944, 8
        %s1946 = smul.addr %s1945, 8
        %s1947 = scalar_lea.vmem %s9, %s1946
      $region68: #{self_attention_block.1} parent=63 // pred_fallthru
        _
    $region64: #{self_attention_block.1} parent=5 // pred_fallthru
      _
  $region6: #{self_attention_block.1} parent=0 // loop_footer
    %s19 = sadd.s32 1, %s15
  $region7: #{self_attention_block.1} parent=0 // loop_footer_branch
    %14 = sbr.rel target = $region3
  $region8: #{self_attention_block.1} parent=0 // loop_exit
    _

</llo_original>
